<compile_context>
chip_gen: v5e
topology: v5e:2x2
jax: 0.10.0
libtpu: 0.0.40
codegen_flags: <defaults>
</compile_context>

<pallas_src>
import functools

import jax
import jax.numpy as jnp
from jax.experimental import pallas as pl
from jax.experimental.pallas import tpu as pltpu

BN_EPS = 1e-5
LANE = 128      # channel dims padded to a multiple of this (lane width)
W_HALO = 8      # left halo width along W in the conv1-output scratch
                # (8 keeps the interior store sublane-aligned)


# --------------------------------------------------------------------------
# Fused Pallas kernel: one grid step == one batch image
# --------------------------------------------------------------------------
def _bottleneck_kernel(*refs, stride, Ho, Wo, has_sc_conv):
    if has_sc_conv:
        (x_ref, w1_ref, w2_ref, w3_ref, ws_ref,
         s1_ref, b1_ref, s2_ref, b2_ref, s3_ref, b3_ref, ss_ref, bs_ref,
         o_ref, t1_ref) = refs
    else:
        (x_ref, w1_ref, w2_ref, w3_ref,
         s1_ref, b1_ref, s2_ref, b2_ref, s3_ref, b3_ref,
         o_ref, t1_ref) = refs
        ws_ref = ss_ref = bs_ref = None

    s = stride
    M = Ho * Wo
    Pp = w1_ref.shape[1]        # padded mid-channel count

    # ---- conv1 (1x1) + BN1 + ReLU, one matmul per stride phase -------------
    # Results go into a spatially zero-padded VMEM scratch laid out per stride
    # phase, so the strided 3x3 conv below only needs contiguous shifted
    # windows (no strided loads).
    t1_ref[...] = jnp.zeros_like(t1_ref)          # zero the halo (and interior)
    w1 = w1_ref[...]
    for ph in range(s):
        for pw in range(s):
            xp = x_ref[0, ph * s + pw]            # (M, Cin_p) bf16
            acc = jnp.dot(xp, w1, preferred_element_type=jnp.float32)
            act = jnp.maximum(acc * s1_ref[...] + b1_ref[...], 0.0)
            t1_ref[ph * s + pw, 1:1 + Ho, W_HALO:W_HALO + Wo, :] = (
                act.reshape(Ho, Wo, Pp))

    # ---- conv2 (3x3, stride, pad=1) + BN2 + ReLU: 9 accumulated matmuls ----
    acc2 = jnp.zeros((M, Pp), jnp.float32)
    for dh in range(3):
        ph, oh = (dh - 1) % s, (dh - 1) // s
        for dw in range(3):
            pw, ow = (dw - 1) % s, (dw - 1) // s
            win = t1_ref[ph * s + pw,
                         1 + oh:1 + oh + Ho,
                         W_HALO + ow:W_HALO + ow + Wo, :]
            lhs = win.reshape(M, Pp).astype(jnp.bfloat16)
            acc2 = acc2 + jnp.dot(lhs, w2_ref[dh * 3 + dw],
                                  preferred_element_type=jnp.float32)
    act2 = jnp.maximum(acc2 * s2_ref[...] + b2_ref[...], 0.0)

    # ---- conv3 (1x1) + BN3 --------------------------------------------------
    acc3 = jnp.dot(act2.astype(jnp.bfloat16), w3_ref[...],
                   preferred_element_type=jnp.float32)
    out = acc3 * s3_ref[...] + b3_ref[...]

    # ---- shortcut + residual add + ReLU (fused into the same kernel) --------
    if has_sc_conv:
        xs = x_ref[0, 0]                          # phase (0,0) == stride-s subsampled x
        accs = jnp.dot(xs, ws_ref[...], preferred_element_type=jnp.float32)
        sc = accs * ss_ref[...] + bs_ref[...]
    else:
        sc = x_ref[0, 0].astype(jnp.float32)      # identity shortcut (stride==1)

    o_ref[0] = jnp.maximum(out + sc, 0.0).astype(o_ref.dtype)


# --------------------------------------------------------------------------
# Wrapper: layout / padding / BN folding + single pallas_call
# --------------------------------------------------------------------------
def _round_up(n, m=LANE):
    return ((n + m - 1) // m) * m


def _pad_last(x, t):
    pad = [(0, 0)] * (x.ndim - 1) + [(0, t - x.shape[-1])]
    return jnp.pad(x, pad)


def _pad_last2(x, t0, t1):
    pad = [(0, 0)] * (x.ndim - 2) + [(0, t0 - x.shape[-2]), (0, t1 - x.shape[-1])]
    return jnp.pad(x, pad)


def _fold_bn(bn, cpad):
    scale = bn["gamma"] / jnp.sqrt(bn["var"] + BN_EPS)
    bias = bn["beta"] - bn["mean"] * scale
    scale = _pad_last(scale, cpad).reshape(1, cpad).astype(jnp.float32)
    bias = _pad_last(bias, cpad).reshape(1, cpad).astype(jnp.float32)
    return scale, bias


def bottleneck_forward(x_nchw, params, *, stride):
    N, Cin, H, W = x_nchw.shape
    s = stride
    assert H % s == 0 and W % s == 0, "spatial dims must be divisible by stride"
    Ho, Wo = H // s, W // s
    M = Ho * Wo

    planes = params["w1"].shape[0]
    Cout = params["w3"].shape[0]
    Cin_p, Pp, Cout_p = _round_up(Cin), _round_up(planes), _round_up(Cout)
    has_sc_conv = params.get("ws") is not None

    # ---- one-time input re-layout: NCHW -> stride-phase NHWC, bf16 ----------
    # x_phase[n, ph*s+pw, i*Wo+j, c] = x[n, c, s*i+ph, s*j+pw]
    x = jnp.transpose(x_nchw, (0, 2, 3, 1))                   # NHWC
    x = _pad_last(x, Cin_p)
    x = x.reshape(N, Ho, s, Wo, s, Cin_p)
    x = jnp.transpose(x, (0, 2, 4, 1, 3, 5))                  # (N, s, s, Ho, Wo, C)
    x = x.reshape(N, s * s, M, Cin_p).astype(jnp.bfloat16)

    # ---- weights: matmul layout, zero-padded channels, bf16 ------------------
    w1 = _pad_last2(params["w1"][:, :, 0, 0].T, Cin_p, Pp).astype(jnp.bfloat16)
    w2 = jnp.transpose(params["w2"], (2, 3, 1, 0)).reshape(9, planes, planes)
    w2 = _pad_last2(w2, Pp, Pp).astype(jnp.bfloat16)
    w3 = _pad_last2(params["w3"][:, :, 0, 0].T, Pp, Cout_p).astype(jnp.bfloat16)
    s1, b1 = _fold_bn(params["bn1"], Pp)
    s2, b2 = _fold_bn(params["bn2"], Pp)
    s3, b3 = _fold_bn(params["bn3"], Cout_p)

    inputs = [x, w1, w2, w3]
    in_specs = [
        pl.BlockSpec((1, s * s, M, Cin_p), lambda n: (n, 0, 0, 0)),
        pl.BlockSpec((Cin_p, Pp), lambda n: (0, 0)),
        pl.BlockSpec((9, Pp, Pp), lambda n: (0, 0, 0)),
        pl.BlockSpec((Pp, Cout_p), lambda n: (0, 0)),
    ]
    if has_sc_conv:
        ws = _pad_last2(params["ws"][:, :, 0, 0].T, Cin_p, Cout_p).astype(jnp.bfloat16)
        ss, bs = _fold_bn(params["bns"], Cout_p)
        inputs.append(ws)
        in_specs.append(pl.BlockSpec((Cin_p, Cout_p), lambda n: (0, 0)))
        affine = [s1, b1, s2, b2, s3, b3, ss, bs]
    else:
        affine = [s1, b1, s2, b2, s3, b3]
    inputs += affine
    in_specs += [pl.BlockSpec(a.shape, lambda n: (0, 0)) for a in affine]

    # Advisory cost estimate for XLA's scheduler.
    flops_per_row = 2 * (Cin_p * Pp + 9 * Pp * Pp + Pp * Cout_p
                         + (Cin_p * Cout_p if has_sc_conv else 0))
    cost = pl.CostEstimate(
        flops=N * M * flops_per_row,
        transcendentals=0,
        bytes_accessed=int(sum(v.size * v.dtype.itemsize for v in inputs)
                           + N * M * Cout_p * 4),
    )

    kernel = functools.partial(_bottleneck_kernel, stride=s, Ho=Ho, Wo=Wo,
                               has_sc_conv=has_sc_conv)
    out = pl.pallas_call(
        kernel,
        out_shape=jax.ShapeDtypeStruct((N, M, Cout_p), jnp.float32),
        grid=(N,),
        in_specs=in_specs,
        out_specs=pl.BlockSpec((1, M, Cout_p), lambda n: (n, 0, 0)),
        scratch_shapes=[
            pltpu.VMEM((s * s, Ho + 2, Wo + W_HALO + 1, Pp), jnp.float32)],
        compiler_params=pltpu.CompilerParams(
            dimension_semantics=("parallel",)),
        cost_estimate=cost,
    )(*inputs)

    y = out.reshape(N, Ho, Wo, Cout_p)[..., :Cout]
    return jnp.transpose(y, (0, 3, 1, 2))                     # NHWC -> NCHW


# --------------------------------------------------------------------------
# Pure-JAX reference (for correctness check)
# --------------------------------------------------------------------------
def ref_forward(x, params, *, stride):
    def conv(x, w, s=1, p=0):
        return jax.lax.conv_general_dilated(
            x, w, (s, s), [(p, p), (p, p)],
            dimension_numbers=("NCHW", "OIHW", "NCHW"))

    def bn(x, b):
        scale = b["gamma"] / jnp.sqrt(b["var"] + BN_EPS)
        bias = b["beta"] - b["mean"] * scale
        return x * scale[None, :, None, None] + bias[None, :, None, None]

    out = jax.nn.relu(bn(conv(x, params["w1"]), params["bn1"]))
    out = jax.nn.relu(bn(conv(out, params["w2"], s=stride, p=1), params["bn2"]))
    out = bn(conv(out, params["w3"]), params["bn3"])
    if params.get("ws") is not None:
        sc = bn(conv(x, params["ws"], s=stride), params["bns"])
    else:
        sc = x
    return jax.nn.relu(out + sc)


# --------------------------------------------------------------------------
# Deterministic parameter init
# --------------------------------------------------------------------------
def init_params(key, in_planes, planes, stride, expansion=4):
    keys = iter(jax.random.split(key, 32))

    def conv_w(cout, cin, k):
        return 0.1 * jax.random.normal(next(keys), (cout, cin, k, k), jnp.float32)

    def bn_p(c):
        return {
            "gamma": jax.random.uniform(next(keys), (c,), jnp.float32, 0.5, 1.5),
            "beta":  0.1 * jax.random.normal(next(keys), (c,), jnp.float32),
            "mean":  0.1 * jax.random.normal(next(keys), (c,), jnp.float32),
            "var":   jax.random.uniform(next(keys), (c,), jnp.float32, 0.5, 1.5),
        }

    out_planes = expansion * planes
    params = {
        "w1": conv_w(planes, in_planes, 1),     "bn1": bn_p(planes),
        "w2": conv_w(planes, planes, 3),        "bn2": bn_p(planes),
        "w3": conv_w(out_planes, planes, 1),    "bn3": bn_p(out_planes),
        "ws": None, "bns": None,
    }
    if stride != 1 or in_planes != out_planes:
        params["ws"] = conv_w(out_planes, in_planes, 1)
        params["bns"] = bn_p(out_planes)
    return params


# --------------------------------------------------------------------------
if __name__ == "__main__":
    key = jax.random.PRNGKey(0)
    k_x1, k_p1, k_x2, k_p2 = jax.random.split(key, 4)

    # Case 1: projection shortcut (stride=2, channel expansion).
    in_planes, planes, stride = 4, 4, 2
    x1 = jax.random.normal(k_x1, (2, in_planes, 16, 16), jnp.float32)  # NCHW
    p1 = init_params(k_p1, in_planes, planes, stride)
    fwd1 = jax.jit(functools.partial(bottleneck_forward, stride=stride))
    y1 = jax.block_until_ready(fwd1(x1, p1))
    y1_ref = jax.block_until_ready(ref_forward(x1, p1, stride=stride))
    assert y1.shape == y1_ref.shape == (2, 4 * planes, 8, 8), y1.shape
    # bf16 MXU operands with f32 accumulation -> compare at bf16-level tolerance.
    assert jnp.allclose(y1, y1_ref, rtol=2e-2, atol=2e-2), \
        float(jnp.max(jnp.abs(y1 - y1_ref)))

    # Case 2: identity shortcut (stride=1, in_planes == expansion*planes).
    in_planes2, planes2, stride2 = 16, 4, 1
    x2 = jax.random.normal(k_x2, (2, in_planes2, 16, 16), jnp.float32)
    p2 = init_params(k_p2, in_planes2, planes2, stride2)
    fwd2 = jax.jit(functools.partial(bottleneck_forward, stride=stride2))
    y2 = jax.block_until_ready(fwd2(x2, p2))
    y2_ref = jax.block_until_ready(ref_forward(x2, p2, stride=stride2))
    assert y2.shape == y2_ref.shape == (2, 16, 16, 16), y2.shape
    assert jnp.allclose(y2, y2_ref, rtol=2e-2, atol=2e-2), \
        float(jnp.max(jnp.abs(y2 - y2_ref)))

    print("KERNEL_OK")
</pallas_src>

<mosaic_0001>
module attributes {stable_mosaic.version = 11 : i64} {
  func.func @_bottleneck_kernel(%arg0: i32, %arg1: memref<1x4x64x128xbf16, #tpu.memory_space<vmem>>, %arg2: memref<128x128xbf16, #tpu.memory_space<vmem>>, %arg3: memref<9x128x128xbf16, #tpu.memory_space<vmem>>, %arg4: memref<128x128xbf16, #tpu.memory_space<vmem>>, %arg5: memref<128x128xbf16, #tpu.memory_space<vmem>>, %arg6: memref<1x128xf32, #tpu.memory_space<vmem>>, %arg7: memref<1x128xf32, #tpu.memory_space<vmem>>, %arg8: memref<1x128xf32, #tpu.memory_space<vmem>>, %arg9: memref<1x128xf32, #tpu.memory_space<vmem>>, %arg10: memref<1x128xf32, #tpu.memory_space<vmem>>, %arg11: memref<1x128xf32, #tpu.memory_space<vmem>>, %arg12: memref<1x128xf32, #tpu.memory_space<vmem>>, %arg13: memref<1x128xf32, #tpu.memory_space<vmem>>, %arg14: memref<1x64x128xf32, #tpu.memory_space<vmem>>, %arg15: memref<4x10x17x128xf32, #tpu.memory_space<vmem>>) attributes {dimension_semantics = [#tpu.dimension_semantics<parallel>], iteration_bounds = array<i64: 2>, scalar_prefetch = 0 : i64, scratch_operands = 1 : i64, tpu.core_type = #tpu.core_type<tc>, window_params = [{transform_indices = @transform_0, window_bounds = array<i64: 1, 4, 64, 128>}, {pipeline_mode = #tpu.pipeline_mode<synchronous>, transform_indices = @transform_1, window_bounds = array<i64: 128, 128>}, {pipeline_mode = #tpu.pipeline_mode<synchronous>, transform_indices = @transform_2, window_bounds = array<i64: 9, 128, 128>}, {pipeline_mode = #tpu.pipeline_mode<synchronous>, transform_indices = @transform_3, window_bounds = array<i64: 128, 128>}, {pipeline_mode = #tpu.pipeline_mode<synchronous>, transform_indices = @transform_4, window_bounds = array<i64: 128, 128>}, {pipeline_mode = #tpu.pipeline_mode<synchronous>, transform_indices = @transform_5, window_bounds = array<i64: 1, 128>}, {pipeline_mode = #tpu.pipeline_mode<synchronous>, transform_indices = @transform_6, window_bounds = array<i64: 1, 128>}, {pipeline_mode = #tpu.pipeline_mode<synchronous>, transform_indices = @transform_7, window_bounds = array<i64: 1, 128>}, {pipeline_mode = #tpu.pipeline_mode<synchronous>, transform_indices = @transform_8, window_bounds = array<i64: 1, 128>}, {pipeline_mode = #tpu.pipeline_mode<synchronous>, transform_indices = @transform_9, window_bounds = array<i64: 1, 128>}, {pipeline_mode = #tpu.pipeline_mode<synchronous>, transform_indices = @transform_10, window_bounds = array<i64: 1, 128>}, {pipeline_mode = #tpu.pipeline_mode<synchronous>, transform_indices = @transform_11, window_bounds = array<i64: 1, 128>}, {pipeline_mode = #tpu.pipeline_mode<synchronous>, transform_indices = @transform_12, window_bounds = array<i64: 1, 128>}, {transform_indices = @transform_13, window_bounds = array<i64: 1, 64, 128>}]} {
    %cst = arith.constant 0.000000e+00 : f32
    %0 = vector.broadcast %cst : f32 to vector<4x10x17x128xf32>
    %c0 = arith.constant 0 : index
    %c0_0 = arith.constant 0 : index
    %c0_1 = arith.constant 0 : index
    %c0_2 = arith.constant 0 : index
    %1 = vector.load %arg15[%c0, %c0_0, %c0_1, %c0_2] : memref<4x10x17x128xf32, #tpu.memory_space<vmem>>, vector<4x10x17x128xf32>
    tpu.vector_store %arg15[%c0, %c0_0, %c0_1, %c0_2], %0 {strides = array<i32>} : memref<4x10x17x128xf32, #tpu.memory_space<vmem>>, vector<4x10x17x128xf32>,
    %c0_3 = arith.constant 0 : index
    %c0_4 = arith.constant 0 : index
    %2 = vector.load %arg2[%c0_3, %c0_4] : memref<128x128xbf16, #tpu.memory_space<vmem>>, vector<128x128xbf16>
    %c0_5 = arith.constant 0 : index
    %c0_6 = arith.constant 0 : index
    %c0_7 = arith.constant 0 : index
    %c0_8 = arith.constant 0 : index
    %3 = vector.load %arg1[%c0_5, %c0_6, %c0_7, %c0_8] : memref<1x4x64x128xbf16, #tpu.memory_space<vmem>>, vector<1x1x64x128xbf16>
    %4 = vector.shape_cast %3 : vector<1x1x64x128xbf16> to vector<64x128xbf16>
    %cst_9 = arith.constant dense<0.000000e+00> : vector<64x128xf32>
    %5 = tpu.matmul %4, %2, %cst_9 {dimension_numbers = #tpu.dot_dimension_numbers<[1], [0], [0], [1], [0, 0, 1, 1], [], []>} : vector<64x128xbf16>, vector<128x128xbf16>, vector<64x128xf32> -> vector<64x128xf32>
    %c0_10 = arith.constant 0 : index
    %c0_11 = arith.constant 0 : index
    %6 = vector.load %arg6[%c0_10, %c0_11] : memref<1x128xf32, #tpu.memory_space<vmem>>, vector<1x128xf32>
    %7 = vector.broadcast %6 : vector<1x128xf32> to vector<64x128xf32>
    %8 = arith.mulf %5, %7 : vector<64x128xf32>
    %c0_12 = arith.constant 0 : index
    %c0_13 = arith.constant 0 : index
    %9 = vector.load %arg7[%c0_12, %c0_13] : memref<1x128xf32, #tpu.memory_space<vmem>>, vector<1x128xf32>
    %10 = vector.broadcast %9 : vector<1x128xf32> to vector<64x128xf32>
    %11 = arith.addf %8, %10 : vector<64x128xf32>
    %cst_14 = arith.constant 0.000000e+00 : f32
    %12 = vector.broadcast %cst_14 : f32 to vector<64x128xf32>
    %13 = arith.maximumf %11, %12 : vector<64x128xf32>
    %14 = vector.shape_cast %13 : vector<64x128xf32> to vector<8x8x128xf32>
    %c0_15 = arith.constant 0 : index
    %c1 = arith.constant 1 : index
    %c8 = arith.constant 8 : index
    %c0_16 = arith.constant 0 : index
    %15 = vector.load %arg15[%c0_15, %c1, %c8, %c0_16] : memref<4x10x17x128xf32, #tpu.memory_space<vmem>>, vector<1x8x8x128xf32>
    %16 = vector.shape_cast %15 : vector<1x8x8x128xf32> to vector<8x8x128xf32>
    %17 = vector.shape_cast %14 : vector<8x8x128xf32> to vector<1x8x8x128xf32>
    tpu.vector_store %arg15[%c0_15, %c1, %c8, %c0_16], %17 {strides = array<i32>} : memref<4x10x17x128xf32, #tpu.memory_space<vmem>>, vector<1x8x8x128xf32>,
    %c0_17 = arith.constant 0 : index
    %c1_18 = arith.constant 1 : index
    %c0_19 = arith.constant 0 : index
    %c0_20 = arith.constant 0 : index
    %18 = vector.load %arg1[%c0_17, %c1_18, %c0_19, %c0_20] : memref<1x4x64x128xbf16, #tpu.memory_space<vmem>>, vector<1x1x64x128xbf16>
    %19 = vector.shape_cast %18 : vector<1x1x64x128xbf16> to vector<64x128xbf16>
    %cst_21 = arith.constant dense<0.000000e+00> : vector<64x128xf32>
    %20 = tpu.matmul %19, %2, %cst_21 {dimension_numbers = #tpu.dot_dimension_numbers<[1], [0], [0], [1], [0, 0, 1, 1], [], []>} : vector<64x128xbf16>, vector<128x128xbf16>, vector<64x128xf32> -> vector<64x128xf32>
    %c0_22 = arith.constant 0 : index
    %c0_23 = arith.constant 0 : index
    %21 = vector.load %arg6[%c0_22, %c0_23] : memref<1x128xf32, #tpu.memory_space<vmem>>, vector<1x128xf32>
    %22 = vector.broadcast %21 : vector<1x128xf32> to vector<64x128xf32>
    %23 = arith.mulf %20, %22 : vector<64x128xf32>
    %c0_24 = arith.constant 0 : index
    %c0_25 = arith.constant 0 : index
    %24 = vector.load %arg7[%c0_24, %c0_25] : memref<1x128xf32, #tpu.memory_space<vmem>>, vector<1x128xf32>
    %25 = vector.broadcast %24 : vector<1x128xf32> to vector<64x128xf32>
    %26 = arith.addf %23, %25 : vector<64x128xf32>
    %cst_26 = arith.constant 0.000000e+00 : f32
    %27 = vector.broadcast %cst_26 : f32 to vector<64x128xf32>
    %28 = arith.maximumf %26, %27 : vector<64x128xf32>
    %29 = vector.shape_cast %28 : vector<64x128xf32> to vector<8x8x128xf32>
    %c1_27 = arith.constant 1 : index
    %c1_28 = arith.constant 1 : index
    %c8_29 = arith.constant 8 : index
    %c0_30 = arith.constant 0 : index
    %30 = vector.load %arg15[%c1_27, %c1_28, %c8_29, %c0_30] : memref<4x10x17x128xf32, #tpu.memory_space<vmem>>, vector<1x8x8x128xf32>
    %31 = vector.shape_cast %30 : vector<1x8x8x128xf32> to vector<8x8x128xf32>
    %32 = vector.shape_cast %29 : vector<8x8x128xf32> to vector<1x8x8x128xf32>
    tpu.vector_store %arg15[%c1_27, %c1_28, %c8_29, %c0_30], %32 {strides = array<i32>} : memref<4x10x17x128xf32, #tpu.memory_space<vmem>>, vector<1x8x8x128xf32>,
    %c0_31 = arith.constant 0 : index
    %c2 = arith.constant 2 : index
    %c0_32 = arith.constant 0 : index
    %c0_33 = arith.constant 0 : index
    %33 = vector.load %arg1[%c0_31, %c2, %c0_32, %c0_33] : memref<1x4x64x128xbf16, #tpu.memory_space<vmem>>, vector<1x1x64x128xbf16>
    %34 = vector.shape_cast %33 : vector<1x1x64x128xbf16> to vector<64x128xbf16>
    %cst_34 = arith.constant dense<0.000000e+00> : vector<64x128xf32>
    %35 = tpu.matmul %34, %2, %cst_34 {dimension_numbers = #tpu.dot_dimension_numbers<[1], [0], [0], [1], [0, 0, 1, 1], [], []>} : vector<64x128xbf16>, vector<128x128xbf16>, vector<64x128xf32> -> vector<64x128xf32>
    %c0_35 = arith.constant 0 : index
    %c0_36 = arith.constant 0 : index
    %36 = vector.load %arg6[%c0_35, %c0_36] : memref<1x128xf32, #tpu.memory_space<vmem>>, vector<1x128xf32>
    %37 = vector.broadcast %36 : vector<1x128xf32> to vector<64x128xf32>
    %38 = arith.mulf %35, %37 : vector<64x128xf32>
    %c0_37 = arith.constant 0 : index
    %c0_38 = arith.constant 0 : index
    %39 = vector.load %arg7[%c0_37, %c0_38] : memref<1x128xf32, #tpu.memory_space<vmem>>, vector<1x128xf32>
    %40 = vector.broadcast %39 : vector<1x128xf32> to vector<64x128xf32>
    %41 = arith.addf %38, %40 : vector<64x128xf32>
    %cst_39 = arith.constant 0.000000e+00 : f32
    %42 = vector.broadcast %cst_39 : f32 to vector<64x128xf32>
    %43 = arith.maximumf %41, %42 : vector<64x128xf32>
    %44 = vector.shape_cast %43 : vector<64x128xf32> to vector<8x8x128xf32>
    %c2_40 = arith.constant 2 : index
    %c1_41 = arith.constant 1 : index
    %c8_42 = arith.constant 8 : index
    %c0_43 = arith.constant 0 : index
    %45 = vector.load %arg15[%c2_40, %c1_41, %c8_42, %c0_43] : memref<4x10x17x128xf32, #tpu.memory_space<vmem>>, vector<1x8x8x128xf32>
    %46 = vector.shape_cast %45 : vector<1x8x8x128xf32> to vector<8x8x128xf32>
    %47 = vector.shape_cast %44 : vector<8x8x128xf32> to vector<1x8x8x128xf32>
    tpu.vector_store %arg15[%c2_40, %c1_41, %c8_42, %c0_43], %47 {strides = array<i32>} : memref<4x10x17x128xf32, #tpu.memory_space<vmem>>, vector<1x8x8x128xf32>,
    %c0_44 = arith.constant 0 : index
    %c3 = arith.constant 3 : index
    %c0_45 = arith.constant 0 : index
    %c0_46 = arith.constant 0 : index
    %48 = vector.load %arg1[%c0_44, %c3, %c0_45, %c0_46] : memref<1x4x64x128xbf16, #tpu.memory_space<vmem>>, vector<1x1x64x128xbf16>
    %49 = vector.shape_cast %48 : vector<1x1x64x128xbf16> to vector<64x128xbf16>
    %cst_47 = arith.constant dense<0.000000e+00> : vector<64x128xf32>
    %50 = tpu.matmul %49, %2, %cst_47 {dimension_numbers = #tpu.dot_dimension_numbers<[1], [0], [0], [1], [0, 0, 1, 1], [], []>} : vector<64x128xbf16>, vector<128x128xbf16>, vector<64x128xf32> -> vector<64x128xf32>
    %c0_48 = arith.constant 0 : index
    %c0_49 = arith.constant 0 : index
    %51 = vector.load %arg6[%c0_48, %c0_49] : memref<1x128xf32, #tpu.memory_space<vmem>>, vector<1x128xf32>
    %52 = vector.broadcast %51 : vector<1x128xf32> to vector<64x128xf32>
    %53 = arith.mulf %50, %52 : vector<64x128xf32>
    %c0_50 = arith.constant 0 : index
    %c0_51 = arith.constant 0 : index
    %54 = vector.load %arg7[%c0_50, %c0_51] : memref<1x128xf32, #tpu.memory_space<vmem>>, vector<1x128xf32>
    %55 = vector.broadcast %54 : vector<1x128xf32> to vector<64x128xf32>
    %56 = arith.addf %53, %55 : vector<64x128xf32>
    %cst_52 = arith.constant 0.000000e+00 : f32
    %57 = vector.broadcast %cst_52 : f32 to vector<64x128xf32>
    %58 = arith.maximumf %56, %57 : vector<64x128xf32>
    %59 = vector.shape_cast %58 : vector<64x128xf32> to vector<8x8x128xf32>
    %c3_53 = arith.constant 3 : index
    %c1_54 = arith.constant 1 : index
    %c8_55 = arith.constant 8 : index
    %c0_56 = arith.constant 0 : index
    %60 = vector.load %arg15[%c3_53, %c1_54, %c8_55, %c0_56] : memref<4x10x17x128xf32, #tpu.memory_space<vmem>>, vector<1x8x8x128xf32>
    %61 = vector.shape_cast %60 : vector<1x8x8x128xf32> to vector<8x8x128xf32>
    %62 = vector.shape_cast %59 : vector<8x8x128xf32> to vector<1x8x8x128xf32>
    tpu.vector_store %arg15[%c3_53, %c1_54, %c8_55, %c0_56], %62 {strides = array<i32>} : memref<4x10x17x128xf32, #tpu.memory_space<vmem>>, vector<1x8x8x128xf32>,
    %cst_57 = arith.constant 0.000000e+00 : f32
    %63 = vector.broadcast %cst_57 : f32 to vector<64x128xf32>
    %c3_58 = arith.constant 3 : index
    %c0_59 = arith.constant 0 : index
    %c7 = arith.constant 7 : index
    %c0_60 = arith.constant 0 : index
    %64 = vector.load %arg15[%c3_58, %c0_59, %c7, %c0_60] : memref<4x10x17x128xf32, #tpu.memory_space<vmem>>, vector<1x8x8x128xf32>
    %65 = vector.shape_cast %64 : vector<1x8x8x128xf32> to vector<8x8x128xf32>
    %66 = vector.shape_cast %65 : vector<8x8x128xf32> to vector<64x128xf32>
    %67 = arith.truncf %66 : vector<64x128xf32> to vector<64x128xbf16>
    %c0_61 = arith.constant 0 : index
    %c0_62 = arith.constant 0 : index
    %c0_63 = arith.constant 0 : index
    %68 = vector.load %arg3[%c0_61, %c0_62, %c0_63] : memref<9x128x128xbf16, #tpu.memory_space<vmem>>, vector<1x128x128xbf16>
    %69 = vector.shape_cast %68 : vector<1x128x128xbf16> to vector<128x128xbf16>
    %cst_64 = arith.constant dense<0.000000e+00> : vector<64x128xf32>
    %70 = tpu.matmul %67, %69, %cst_64 {dimension_numbers = #tpu.dot_dimension_numbers<[1], [0], [0], [1], [0, 0, 1, 1], [], []>} : vector<64x128xbf16>, vector<128x128xbf16>, vector<64x128xf32> -> vector<64x128xf32>
    %71 = arith.addf %63, %70 : vector<64x128xf32>
    %c2_65 = arith.constant 2 : index
    %c0_66 = arith.constant 0 : index
    %c8_67 = arith.constant 8 : index
    %c0_68 = arith.constant 0 : index
    %72 = vector.load %arg15[%c2_65, %c0_66, %c8_67, %c0_68] : memref<4x10x17x128xf32, #tpu.memory_space<vmem>>, vector<1x8x8x128xf32>
    %73 = vector.shape_cast %72 : vector<1x8x8x128xf32> to vector<8x8x128xf32>
    %74 = vector.shape_cast %73 : vector<8x8x128xf32> to vector<64x128xf32>
    %75 = arith.truncf %74 : vector<64x128xf32> to vector<64x128xbf16>
    %c1_69 = arith.constant 1 : index
    %c0_70 = arith.constant 0 : index
    %c0_71 = arith.constant 0 : index
    %76 = vector.load %arg3[%c1_69, %c0_70, %c0_71] : memref<9x128x128xbf16, #tpu.memory_space<vmem>>, vector<1x128x128xbf16>
    %77 = vector.shape_cast %76 : vector<1x128x128xbf16> to vector<128x128xbf16>
    %cst_72 = arith.constant dense<0.000000e+00> : vector<64x128xf32>
    %78 = tpu.matmul %75, %77, %cst_72 {dimension_numbers = #tpu.dot_dimension_numbers<[1], [0], [0], [1], [0, 0, 1, 1], [], []>} : vector<64x128xbf16>, vector<128x128xbf16>, vector<64x128xf32> -> vector<64x128xf32>
    %79 = arith.addf %71, %78 : vector<64x128xf32>
    %c3_73 = arith.constant 3 : index
    %c0_74 = arith.constant 0 : index
    %c8_75 = arith.constant 8 : index
    %c0_76 = arith.constant 0 : index
    %80 = vector.load %arg15[%c3_73, %c0_74, %c8_75, %c0_76] : memref<4x10x17x128xf32, #tpu.memory_space<vmem>>, vector<1x8x8x128xf32>
    %81 = vector.shape_cast %80 : vector<1x8x8x128xf32> to vector<8x8x128xf32>
    %82 = vector.shape_cast %81 : vector<8x8x128xf32> to vector<64x128xf32>
    %83 = arith.truncf %82 : vector<64x128xf32> to vector<64x128xbf16>
    %c2_77 = arith.constant 2 : index
    %c0_78 = arith.constant 0 : index
    %c0_79 = arith.constant 0 : index
    %84 = vector.load %arg3[%c2_77, %c0_78, %c0_79] : memref<9x128x128xbf16, #tpu.memory_space<vmem>>, vector<1x128x128xbf16>
    %85 = vector.shape_cast %84 : vector<1x128x128xbf16> to vector<128x128xbf16>
    %cst_80 = arith.constant dense<0.000000e+00> : vector<64x128xf32>
    %86 = tpu.matmul %83, %85, %cst_80 {dimension_numbers = #tpu.dot_dimension_numbers<[1], [0], [0], [1], [0, 0, 1, 1], [], []>} : vector<64x128xbf16>, vector<128x128xbf16>, vector<64x128xf32> -> vector<64x128xf32>
    %87 = arith.addf %79, %86 : vector<64x128xf32>
    %c1_81 = arith.constant 1 : index
    %c1_82 = arith.constant 1 : index
    %c7_83 = arith.constant 7 : index
    %c0_84 = arith.constant 0 : index
    %88 = vector.load %arg15[%c1_81, %c1_82, %c7_83, %c0_84] : memref<4x10x17x128xf32, #tpu.memory_space<vmem>>, vector<1x8x8x128xf32>
    %89 = vector.shape_cast %88 : vector<1x8x8x128xf32> to vector<8x8x128xf32>
    %90 = vector.shape_cast %89 : vector<8x8x128xf32> to vector<64x128xf32>
    %91 = arith.truncf %90 : vector<64x128xf32> to vector<64x128xbf16>
    %c3_85 = arith.constant 3 : index
    %c0_86 = arith.constant 0 : index
    %c0_87 = arith.constant 0 : index
    %92 = vector.load %arg3[%c3_85, %c0_86, %c0_87] : memref<9x128x128xbf16, #tpu.memory_space<vmem>>, vector<1x128x128xbf16>
    %93 = vector.shape_cast %92 : vector<1x128x128xbf16> to vector<128x128xbf16>
    %cst_88 = arith.constant dense<0.000000e+00> : vector<64x128xf32>
    %94 = tpu.matmul %91, %93, %cst_88 {dimension_numbers = #tpu.dot_dimension_numbers<[1], [0], [0], [1], [0, 0, 1, 1], [], []>} : vector<64x128xbf16>, vector<128x128xbf16>, vector<64x128xf32> -> vector<64x128xf32>
    %95 = arith.addf %87, %94 : vector<64x128xf32>
    %c0_89 = arith.constant 0 : index
    %c1_90 = arith.constant 1 : index
    %c8_91 = arith.constant 8 : index
    %c0_92 = arith.constant 0 : index
    %96 = vector.load %arg15[%c0_89, %c1_90, %c8_91, %c0_92] : memref<4x10x17x128xf32, #tpu.memory_space<vmem>>, vector<1x8x8x128xf32>
    %97 = vector.shape_cast %96 : vector<1x8x8x128xf32> to vector<8x8x128xf32>
    %98 = vector.shape_cast %97 : vector<8x8x128xf32> to vector<64x128xf32>
    %99 = arith.truncf %98 : vector<64x128xf32> to vector<64x128xbf16>
    %c4 = arith.constant 4 : index
    %c0_93 = arith.constant 0 : index
    %c0_94 = arith.constant 0 : index
    %100 = vector.load %arg3[%c4, %c0_93, %c0_94] : memref<9x128x128xbf16, #tpu.memory_space<vmem>>, vector<1x128x128xbf16>
    %101 = vector.shape_cast %100 : vector<1x128x128xbf16> to vector<128x128xbf16>
    %cst_95 = arith.constant dense<0.000000e+00> : vector<64x128xf32>
    %102 = tpu.matmul %99, %101, %cst_95 {dimension_numbers = #tpu.dot_dimension_numbers<[1], [0], [0], [1], [0, 0, 1, 1], [], []>} : vector<64x128xbf16>, vector<128x128xbf16>, vector<64x128xf32> -> vector<64x128xf32>
    %103 = arith.addf %95, %102 : vector<64x128xf32>
    %c1_96 = arith.constant 1 : index
    %c1_97 = arith.constant 1 : index
    %c8_98 = arith.constant 8 : index
    %c0_99 = arith.constant 0 : index
    %104 = vector.load %arg15[%c1_96, %c1_97, %c8_98, %c0_99] : memref<4x10x17x128xf32, #tpu.memory_space<vmem>>, vector<1x8x8x128xf32>
    %105 = vector.shape_cast %104 : vector<1x8x8x128xf32> to vector<8x8x128xf32>
    %106 = vector.shape_cast %105 : vector<8x8x128xf32> to vector<64x128xf32>
    %107 = arith.truncf %106 : vector<64x128xf32> to vector<64x128xbf16>
    %c5 = arith.constant 5 : index
    %c0_100 = arith.constant 0 : index
    %c0_101 = arith.constant 0 : index
    %108 = vector.load %arg3[%c5, %c0_100, %c0_101] : memref<9x128x128xbf16, #tpu.memory_space<vmem>>, vector<1x128x128xbf16>
    %109 = vector.shape_cast %108 : vector<1x128x128xbf16> to vector<128x128xbf16>
    %cst_102 = arith.constant dense<0.000000e+00> : vector<64x128xf32>
    %110 = tpu.matmul %107, %109, %cst_102 {dimension_numbers = #tpu.dot_dimension_numbers<[1], [0], [0], [1], [0, 0, 1, 1], [], []>} : vector<64x128xbf16>, vector<128x128xbf16>, vector<64x128xf32> -> vector<64x128xf32>
    %111 = arith.addf %103, %110 : vector<64x128xf32>
    %c3_103 = arith.constant 3 : index
    %c1_104 = arith.constant 1 : index
    %c7_105 = arith.constant 7 : index
    %c0_106 = arith.constant 0 : index
    %112 = vector.load %arg15[%c3_103, %c1_104, %c7_105, %c0_106] : memref<4x10x17x128xf32, #tpu.memory_space<vmem>>, vector<1x8x8x128xf32>
    %113 = vector.shape_cast %112 : vector<1x8x8x128xf32> to vector<8x8x128xf32>
    %114 = vector.shape_cast %113 : vector<8x8x128xf32> to vector<64x128xf32>
    %115 = arith.truncf %114 : vector<64x128xf32> to vector<64x128xbf16>
    %c6 = arith.constant 6 : index
    %c0_107 = arith.constant 0 : index
    %c0_108 = arith.constant 0 : index
    %116 = vector.load %arg3[%c6, %c0_107, %c0_108] : memref<9x128x128xbf16, #tpu.memory_space<vmem>>, vector<1x128x128xbf16>
    %117 = vector.shape_cast %116 : vector<1x128x128xbf16> to vector<128x128xbf16>
    %cst_109 = arith.constant dense<0.000000e+00> : vector<64x128xf32>
    %118 = tpu.matmul %115, %117, %cst_109 {dimension_numbers = #tpu.dot_dimension_numbers<[1], [0], [0], [1], [0, 0, 1, 1], [], []>} : vector<64x128xbf16>, vector<128x128xbf16>, vector<64x128xf32> -> vector<64x128xf32>
    %119 = arith.addf %111, %118 : vector<64x128xf32>
    %c2_110 = arith.constant 2 : index
    %c1_111 = arith.constant 1 : index
    %c8_112 = arith.constant 8 : index
    %c0_113 = arith.constant 0 : index
    %120 = vector.load %arg15[%c2_110, %c1_111, %c8_112, %c0_113] : memref<4x10x17x128xf32, #tpu.memory_space<vmem>>, vector<1x8x8x128xf32>
    %121 = vector.shape_cast %120 : vector<1x8x8x128xf32> to vector<8x8x128xf32>
    %122 = vector.shape_cast %121 : vector<8x8x128xf32> to vector<64x128xf32>
    %123 = arith.truncf %122 : vector<64x128xf32> to vector<64x128xbf16>
    %c7_114 = arith.constant 7 : index
    %c0_115 = arith.constant 0 : index
    %c0_116 = arith.constant 0 : index
    %124 = vector.load %arg3[%c7_114, %c0_115, %c0_116] : memref<9x128x128xbf16, #tpu.memory_space<vmem>>, vector<1x128x128xbf16>
    %125 = vector.shape_cast %124 : vector<1x128x128xbf16> to vector<128x128xbf16>
    %cst_117 = arith.constant dense<0.000000e+00> : vector<64x128xf32>
    %126 = tpu.matmul %123, %125, %cst_117 {dimension_numbers = #tpu.dot_dimension_numbers<[1], [0], [0], [1], [0, 0, 1, 1], [], []>} : vector<64x128xbf16>, vector<128x128xbf16>, vector<64x128xf32> -> vector<64x128xf32>
    %127 = arith.addf %119, %126 : vector<64x128xf32>
    %c3_118 = arith.constant 3 : index
    %c1_119 = arith.constant 1 : index
    %c8_120 = arith.constant 8 : index
    %c0_121 = arith.constant 0 : index
    %128 = vector.load %arg15[%c3_118, %c1_119, %c8_120, %c0_121] : memref<4x10x17x128xf32, #tpu.memory_space<vmem>>, vector<1x8x8x128xf32>
    %129 = vector.shape_cast %128 : vector<1x8x8x128xf32> to vector<8x8x128xf32>
    %130 = vector.shape_cast %129 : vector<8x8x128xf32> to vector<64x128xf32>
    %131 = arith.truncf %130 : vector<64x128xf32> to vector<64x128xbf16>
    %c8_122 = arith.constant 8 : index
    %c0_123 = arith.constant 0 : index
    %c0_124 = arith.constant 0 : index
    %132 = vector.load %arg3[%c8_122, %c0_123, %c0_124] : memref<9x128x128xbf16, #tpu.memory_space<vmem>>, vector<1x128x128xbf16>
    %133 = vector.shape_cast %132 : vector<1x128x128xbf16> to vector<128x128xbf16>
    %cst_125 = arith.constant dense<0.000000e+00> : vector<64x128xf32>
    %134 = tpu.matmul %131, %133, %cst_125 {dimension_numbers = #tpu.dot_dimension_numbers<[1], [0], [0], [1], [0, 0, 1, 1], [], []>} : vector<64x128xbf16>, vector<128x128xbf16>, vector<64x128xf32> -> vector<64x128xf32>
    %135 = arith.addf %127, %134 : vector<64x128xf32>
    %c0_126 = arith.constant 0 : index
    %c0_127 = arith.constant 0 : index
    %136 = vector.load %arg8[%c0_126, %c0_127] : memref<1x128xf32, #tpu.memory_space<vmem>>, vector<1x128xf32>
    %137 = vector.broadcast %136 : vector<1x128xf32> to vector<64x128xf32>
    %138 = arith.mulf %135, %137 : vector<64x128xf32>
    %c0_128 = arith.constant 0 : index
    %c0_129 = arith.constant 0 : index
    %139 = vector.load %arg9[%c0_128, %c0_129] : memref<1x128xf32, #tpu.memory_space<vmem>>, vector<1x128xf32>
    %140 = vector.broadcast %139 : vector<1x128xf32> to vector<64x128xf32>
    %141 = arith.addf %138, %140 : vector<64x128xf32>
    %cst_130 = arith.constant 0.000000e+00 : f32
    %142 = vector.broadcast %cst_130 : f32 to vector<64x128xf32>
    %143 = arith.maximumf %141, %142 : vector<64x128xf32>
    %144 = arith.truncf %143 : vector<64x128xf32> to vector<64x128xbf16>
    %c0_131 = arith.constant 0 : index
    %c0_132 = arith.constant 0 : index
    %145 = vector.load %arg4[%c0_131, %c0_132] : memref<128x128xbf16, #tpu.memory_space<vmem>>, vector<128x128xbf16>
    %cst_133 = arith.constant dense<0.000000e+00> : vector<64x128xf32>
    %146 = tpu.matmul %144, %145, %cst_133 {dimension_numbers = #tpu.dot_dimension_numbers<[1], [0], [0], [1], [0, 0, 1, 1], [], []>} : vector<64x128xbf16>, vector<128x128xbf16>, vector<64x128xf32> -> vector<64x128xf32>
    %c0_134 = arith.constant 0 : index
    %c0_135 = arith.constant 0 : index
    %147 = vector.load %arg10[%c0_134, %c0_135] : memref<1x128xf32, #tpu.memory_space<vmem>>, vector<1x128xf32>
    %148 = vector.broadcast %147 : vector<1x128xf32> to vector<64x128xf32>
    %149 = arith.mulf %146, %148 : vector<64x128xf32>
    %c0_136 = arith.constant 0 : index
    %c0_137 = arith.constant 0 : index
    %150 = vector.load %arg11[%c0_136, %c0_137] : memref<1x128xf32, #tpu.memory_space<vmem>>, vector<1x128xf32>
    %151 = vector.broadcast %150 : vector<1x128xf32> to vector<64x128xf32>
    %152 = arith.addf %149, %151 : vector<64x128xf32>
    %c0_138 = arith.constant 0 : index
    %c0_139 = arith.constant 0 : index
    %c0_140 = arith.constant 0 : index
    %c0_141 = arith.constant 0 : index
    %153 = vector.load %arg1[%c0_138, %c0_139, %c0_140, %c0_141] : memref<1x4x64x128xbf16, #tpu.memory_space<vmem>>, vector<1x1x64x128xbf16>
    %154 = vector.shape_cast %153 : vector<1x1x64x128xbf16> to vector<64x128xbf16>
    %c0_142 = arith.constant 0 : index
    %c0_143 = arith.constant 0 : index
    %155 = vector.load %arg5[%c0_142, %c0_143] : memref<128x128xbf16, #tpu.memory_space<vmem>>, vector<128x128xbf16>
    %cst_144 = arith.constant dense<0.000000e+00> : vector<64x128xf32>
    %156 = tpu.matmul %154, %155, %cst_144 {dimension_numbers = #tpu.dot_dimension_numbers<[1], [0], [0], [1], [0, 0, 1, 1], [], []>} : vector<64x128xbf16>, vector<128x128xbf16>, vector<64x128xf32> -> vector<64x128xf32>
    %c0_145 = arith.constant 0 : index
    %c0_146 = arith.constant 0 : index
    %157 = vector.load %arg12[%c0_145, %c0_146] : memref<1x128xf32, #tpu.memory_space<vmem>>, vector<1x128xf32>
    %158 = vector.broadcast %157 : vector<1x128xf32> to vector<64x128xf32>
    %159 = arith.mulf %156, %158 : vector<64x128xf32>
    %c0_147 = arith.constant 0 : index
    %c0_148 = arith.constant 0 : index
    %160 = vector.load %arg13[%c0_147, %c0_148] : memref<1x128xf32, #tpu.memory_space<vmem>>, vector<1x128xf32>
    %161 = vector.broadcast %160 : vector<1x128xf32> to vector<64x128xf32>
    %162 = arith.addf %159, %161 : vector<64x128xf32>
    %163 = arith.addf %152, %162 : vector<64x128xf32>
    %cst_149 = arith.constant 0.000000e+00 : f32
    %164 = vector.broadcast %cst_149 : f32 to vector<64x128xf32>
    %165 = arith.maximumf %163, %164 : vector<64x128xf32>
    %c0_150 = arith.constant 0 : index
    %c0_151 = arith.constant 0 : index
    %c0_152 = arith.constant 0 : index
    %166 = vector.load %arg14[%c0_150, %c0_151, %c0_152] : memref<1x64x128xf32, #tpu.memory_space<vmem>>, vector<1x64x128xf32>
    %167 = vector.shape_cast %166 : vector<1x64x128xf32> to vector<64x128xf32>
    %168 = vector.shape_cast %165 : vector<64x128xf32> to vector<1x64x128xf32>
    tpu.vector_store %arg14[%c0_150, %c0_151, %c0_152], %168 {strides = array<i32>} : memref<1x64x128xf32, #tpu.memory_space<vmem>>, vector<1x64x128xf32>,
    return
  }
  func.func @transform_0(%arg0: i32) -> (i32, i32, i32, i32) {
    %c0_i32 = arith.constant 0 : i32
    %c0_i32_0 = arith.constant 0 : i32
    %c0_i32_1 = arith.constant 0 : i32
    %c0_i32_2 = arith.constant 0 : i32
    return %arg0, %c0_i32, %c0_i32_0, %c0_i32_1 : i32, i32, i32, i32
  }
  func.func @transform_1(%arg0: i32) -> (i32, i32) {
    %c0_i32 = arith.constant 0 : i32
    %c0_i32_0 = arith.constant 0 : i32
    %c0_i32_1 = arith.constant 0 : i32
    return %c0_i32, %c0_i32_0 : i32, i32
  }
  func.func @transform_2(%arg0: i32) -> (i32, i32, i32) {
    %c0_i32 = arith.constant 0 : i32
    %c0_i32_0 = arith.constant 0 : i32
    %c0_i32_1 = arith.constant 0 : i32
    %c0_i32_2 = arith.constant 0 : i32
    return %c0_i32, %c0_i32_0, %c0_i32_1 : i32, i32, i32
  }
  func.func @transform_3(%arg0: i32) -> (i32, i32) {
    %c0_i32 = arith.constant 0 : i32
    %c0_i32_0 = arith.constant 0 : i32
    %c0_i32_1 = arith.constant 0 : i32
    return %c0_i32, %c0_i32_0 : i32, i32
  }
  func.func @transform_4(%arg0: i32) -> (i32, i32) {
    %c0_i32 = arith.constant 0 : i32
    %c0_i32_0 = arith.constant 0 : i32
    %c0_i32_1 = arith.constant 0 : i32
    return %c0_i32, %c0_i32_0 : i32, i32
  }
  func.func @transform_5(%arg0: i32) -> (i32, i32) {
    %c0_i32 = arith.constant 0 : i32
    %c0_i32_0 = arith.constant 0 : i32
    %c0_i32_1 = arith.constant 0 : i32
    return %c0_i32, %c0_i32_0 : i32, i32
  }
  func.func @transform_6(%arg0: i32) -> (i32, i32) {
    %c0_i32 = arith.constant 0 : i32
    %c0_i32_0 = arith.constant 0 : i32
    %c0_i32_1 = arith.constant 0 : i32
    return %c0_i32, %c0_i32_0 : i32, i32
  }
  func.func @transform_7(%arg0: i32) -> (i32, i32) {
    %c0_i32 = arith.constant 0 : i32
    %c0_i32_0 = arith.constant 0 : i32
    %c0_i32_1 = arith.constant 0 : i32
    return %c0_i32, %c0_i32_0 : i32, i32
  }
  func.func @transform_8(%arg0: i32) -> (i32, i32) {
    %c0_i32 = arith.constant 0 : i32
    %c0_i32_0 = arith.constant 0 : i32
    %c0_i32_1 = arith.constant 0 : i32
    return %c0_i32, %c0_i32_0 : i32, i32
  }
  func.func @transform_9(%arg0: i32) -> (i32, i32) {
    %c0_i32 = arith.constant 0 : i32
    %c0_i32_0 = arith.constant 0 : i32
    %c0_i32_1 = arith.constant 0 : i32
    return %c0_i32, %c0_i32_0 : i32, i32
  }
  func.func @transform_10(%arg0: i32) -> (i32, i32) {
    %c0_i32 = arith.constant 0 : i32
    %c0_i32_0 = arith.constant 0 : i32
    %c0_i32_1 = arith.constant 0 : i32
    return %c0_i32, %c0_i32_0 : i32, i32
  }
  func.func @transform_11(%arg0: i32) -> (i32, i32) {
    %c0_i32 = arith.constant 0 : i32
    %c0_i32_0 = arith.constant 0 : i32
    %c0_i32_1 = arith.constant 0 : i32
    return %c0_i32, %c0_i32_0 : i32, i32
  }
  func.func @transform_12(%arg0: i32) -> (i32, i32) {
    %c0_i32 = arith.constant 0 : i32
    %c0_i32_0 = arith.constant 0 : i32
    %c0_i32_1 = arith.constant 0 : i32
    return %c0_i32, %c0_i32_0 : i32, i32
  }
  func.func @transform_13(%arg0: i32) -> (i32, i32, i32) {
    %c0_i32 = arith.constant 0 : i32
    %c0_i32_0 = arith.constant 0 : i32
    %c0_i32_1 = arith.constant 0 : i32
    return %arg0, %c0_i32, %c0_i32_0 : i32, i32, i32
  }
}

</mosaic_0001>

<llo_original>
// kernel: bottleneck_forward.1
$region0: #{bottleneck_forward.1}
  #allocation0 [shape = 'u32[]', space=smem, size = 0x4, offset = 0x4, fixed_abs, tag = 'smem constant byte address 0x4 - core index']
  #allocation1 [shape = 'u32[72,128]{1,0:T(1,128)}', space=vmem, size = 0x9000, scoped, tag = 'internal scratch']
  #allocation2 [shape = 'f32[4,10,17,128]{3,2,1,0:T(8,128)}', space=vmem, size = 0x78000, scoped, tag = 'scratch operand']
  %s0 = inlined_call_operand.vmem [shape: bf16[2,4,64,128], index: 0, kind: input, shape index: {}]
  %s1 = inlined_call_operand.vmem [shape: bf16[128,128], index: 1, kind: input, shape index: {}]
  %s2 = inlined_call_operand.vmem [shape: bf16[9,128,128], index: 2, kind: input, shape index: {}]
  %s3 = inlined_call_operand.vmem [shape: bf16[128,128], index: 3, kind: input, shape index: {}]
  %s4 = inlined_call_operand.vmem [shape: bf16[128,128], index: 4, kind: input, shape index: {}]
  %s5 = inlined_call_operand.vmem [shape: f32[1,128], index: 5, kind: input, shape index: {}]
  %s6 = inlined_call_operand.vmem [shape: f32[1,128], index: 6, kind: input, shape index: {}]
  %s7 = inlined_call_operand.vmem [shape: f32[1,128], index: 7, kind: input, shape index: {}]
  %s8 = inlined_call_operand.vmem [shape: f32[1,128], index: 8, kind: input, shape index: {}]
  %s9 = inlined_call_operand.vmem [shape: f32[1,128], index: 9, kind: input, shape index: {}]
  %s10 = inlined_call_operand.vmem [shape: f32[1,128], index: 10, kind: input, shape index: {}]
  %s11 = inlined_call_operand.vmem [shape: f32[1,128], index: 11, kind: input, shape index: {}]
  %s12 = inlined_call_operand.vmem [shape: f32[1,128], index: 12, kind: input, shape index: {}]
  %s13 = inlined_call_operand.vmem [shape: f32[2,64,128], index: 13, kind: output, shape index: {}]
  %s14 = sld [smem:[#allocation0]]
  $region85: #{bottleneck_forward.1} parent=0
    _
  %s16 = ssub.s32 1, %s14
  %s17 = scalar_select 0, %s16, %s14
  loop: start=0, step=1, limit=4
  $region2: #{bottleneck_forward.1} parent=0 // loop_pre_header
    _
  $region3: #{bottleneck_forward.1} parent=0 // loop_header
    %s19 = sphi 0, %s23
    %p20 = scmp.ge.s32.totalorder %s19, 4
    %s29 = sphi 0, %s31
    %s32 = sphi 0, %s29
    %s33 = sphi 0, %s32
    %s49 = sphi 0, %s33
    %s53 = sphi 0, %s53
    %s55 = sphi 0, %s53
    %s56 = sphi 0, %s55
    %s70 = sphi 0, %s56
    %s74 = sphi 0, %s74
    %s76 = sphi 0, %s74
    %s77 = sphi 0, %s76
    %s91 = sphi 0, %s77
    %s95 = sphi 0, %s95
    %s97 = sphi 0, %s95
    %s98 = sphi 0, %s97
    %s112 = sphi 0, %s98
    %s116 = sphi 0, %s116
    %s118 = sphi 0, %s116
    %s119 = sphi 0, %s118
    %s133 = sphi 0, %s119
    %s137 = sphi 0, %s137
    %s139 = sphi 0, %s137
    %s140 = sphi 0, %s139
    %s154 = sphi 0, %s140
    %s158 = sphi 0, %s158
    %s160 = sphi 0, %s158
    %s161 = sphi 0, %s160
    %s175 = sphi 0, %s161
    %s179 = sphi 0, %s179
    %s181 = sphi 0, %s179
    %s182 = sphi 0, %s181
    %s196 = sphi 0, %s182
    %s200 = sphi 0, %s200
    %s202 = sphi 0, %s200
    %s203 = sphi 0, %s202
    %s217 = sphi 0, %s203
    %s221 = sphi 0, %s221
    %s223 = sphi 0, %s221
    %s224 = sphi 0, %s223
    %s238 = sphi 0, %s224
    %s242 = sphi 0, %s242
    %s244 = sphi 0, %s242
    %s245 = sphi 0, %s244
    %s259 = sphi 0, %s245
    %s263 = sphi 0, %s263
    %s265 = sphi 0, %s263
    %s266 = sphi 0, %s265
    %s280 = sphi 0, %s266
    %s284 = sphi 0, %s284
    %s286 = sphi 0, %s284
    %s287 = sphi 0, %s286
    %s301 = sphi 0, %s287
    %s307 = sphi 0, %s309
    %s310 = sphi 0, %s307
    %s311 = sphi 0, %s310
    %s327 = sphi 0, %s311
  $region4: #{bottleneck_forward.1} parent=0 // loop_header_branch
    %22 = sbr.rel (%p20) target = $region8
  $region5: #{bottleneck_forward.1} parent=0 // loop_body
    %s24 = ssub.s32 %s19, 1
    %s25 = ssub.s32 %s19, 2
    %s26 = sadd.s32 %s19, 1
    %s27 = ssub.s32 %s19, %s26
    %p28 = scmp.eq.s32.totalorder %s27, 0
    %s30 = sadd.s32 %s29, 1
    %s31 = scalar_select %p28, %s29, %s30
    %p34 = pneg %p28
    %p35 = scmp.eq.s32.totalorder %s19, 1
    %p36 = por %p34, %p35
    %p37 = scmp.ne.s32.totalorder %s29, %s32
    %p38 = scmp.eq.s32.totalorder %s19, 0
    %p39 = por %p37, %p38
    %p40 = scmp.ne.s32.totalorder %s29, %s32
    %p41 = scmp.eq.s32.totalorder %s24, 1
    %p42 = por %p40, %p41
    %p43 = scmp.ne.s32.totalorder %s32, %s33
    %p44 = scmp.eq.s32.totalorder %s24, 0
    %p45 = por %p43, %p44
    %p46 = scmp.ne.s32.totalorder %s32, %s33
    %p47 = scmp.eq.s32.totalorder %s25, 1
    %p48 = por %p46, %p47
    %p50 = scmp.ne.s32.totalorder %s33, %s49
    %p51 = scmp.eq.s32.totalorder %s25, 0
    %p52 = por %p50, %p51
    %s54 = sadd.s32 %s53, 1
    %p57 = scmp.eq.s32.totalorder %s19, 1
    %p58 = scmp.ne.s32.totalorder %s53, %s55
    %p59 = scmp.eq.s32.totalorder %s19, 0
    %p60 = por %p58, %p59
    %p61 = scmp.ne.s32.totalorder %s53, %s55
    %p62 = scmp.eq.s32.totalorder %s24, 1
    %p63 = por %p61, %p62
    %p64 = scmp.ne.s32.totalorder %s55, %s56
    %p65 = scmp.eq.s32.totalorder %s24, 0
    %p66 = por %p64, %p65
    %p67 = scmp.ne.s32.totalorder %s55, %s56
    %p68 = scmp.eq.s32.totalorder %s25, 1
    %p69 = por %p67, %p68
    %p71 = scmp.ne.s32.totalorder %s56, %s70
    %p72 = scmp.eq.s32.totalorder %s25, 0
    %p73 = por %p71, %p72
    %s75 = sadd.s32 %s74, 1
    %p78 = scmp.eq.s32.totalorder %s19, 1
    %p79 = scmp.ne.s32.totalorder %s74, %s76
    %p80 = scmp.eq.s32.totalorder %s19, 0
    %p81 = por %p79, %p80
    %p82 = scmp.ne.s32.totalorder %s74, %s76
    %p83 = scmp.eq.s32.totalorder %s24, 1
    %p84 = por %p82, %p83
    %p85 = scmp.ne.s32.totalorder %s76, %s77
    %p86 = scmp.eq.s32.totalorder %s24, 0
    %p87 = por %p85, %p86
    %p88 = scmp.ne.s32.totalorder %s76, %s77
    %p89 = scmp.eq.s32.totalorder %s25, 1
    %p90 = por %p88, %p89
    %p92 = scmp.ne.s32.totalorder %s77, %s91
    %p93 = scmp.eq.s32.totalorder %s25, 0
    %p94 = por %p92, %p93
    %s96 = sadd.s32 %s95, 1
    %p99 = scmp.eq.s32.totalorder %s19, 1
    %p100 = scmp.ne.s32.totalorder %s95, %s97
    %p101 = scmp.eq.s32.totalorder %s19, 0
    %p102 = por %p100, %p101
    %p103 = scmp.ne.s32.totalorder %s95, %s97
    %p104 = scmp.eq.s32.totalorder %s24, 1
    %p105 = por %p103, %p104
    %p106 = scmp.ne.s32.totalorder %s97, %s98
    %p107 = scmp.eq.s32.totalorder %s24, 0
    %p108 = por %p106, %p107
    %p109 = scmp.ne.s32.totalorder %s97, %s98
    %p110 = scmp.eq.s32.totalorder %s25, 1
    %p111 = por %p109, %p110
    %p113 = scmp.ne.s32.totalorder %s98, %s112
    %p114 = scmp.eq.s32.totalorder %s25, 0
    %p115 = por %p113, %p114
    %s117 = sadd.s32 %s116, 1
    %p120 = scmp.eq.s32.totalorder %s19, 1
    %p121 = scmp.ne.s32.totalorder %s116, %s118
    %p122 = scmp.eq.s32.totalorder %s19, 0
    %p123 = por %p121, %p122
    %p124 = scmp.ne.s32.totalorder %s116, %s118
    %p125 = scmp.eq.s32.totalorder %s24, 1
    %p126 = por %p124, %p125
    %p127 = scmp.ne.s32.totalorder %s118, %s119
    %p128 = scmp.eq.s32.totalorder %s24, 0
    %p129 = por %p127, %p128
    %p130 = scmp.ne.s32.totalorder %s118, %s119
    %p131 = scmp.eq.s32.totalorder %s25, 1
    %p132 = por %p130, %p131
    %p134 = scmp.ne.s32.totalorder %s119, %s133
    %p135 = scmp.eq.s32.totalorder %s25, 0
    %p136 = por %p134, %p135
    %s138 = sadd.s32 %s137, 1
    %p141 = scmp.eq.s32.totalorder %s19, 1
    %p142 = scmp.ne.s32.totalorder %s137, %s139
    %p143 = scmp.eq.s32.totalorder %s19, 0
    %p144 = por %p142, %p143
    %p145 = scmp.ne.s32.totalorder %s137, %s139
    %p146 = scmp.eq.s32.totalorder %s24, 1
    %p147 = por %p145, %p146
    %p148 = scmp.ne.s32.totalorder %s139, %s140
    %p149 = scmp.eq.s32.totalorder %s24, 0
    %p150 = por %p148, %p149
    %p151 = scmp.ne.s32.totalorder %s139, %s140
    %p152 = scmp.eq.s32.totalorder %s25, 1
    %p153 = por %p151, %p152
    %p155 = scmp.ne.s32.totalorder %s140, %s154
    %p156 = scmp.eq.s32.totalorder %s25, 0
    %p157 = por %p155, %p156
    %s159 = sadd.s32 %s158, 1
    %p162 = scmp.eq.s32.totalorder %s19, 1
    %p163 = scmp.ne.s32.totalorder %s158, %s160
    %p164 = scmp.eq.s32.totalorder %s19, 0
    %p165 = por %p163, %p164
    %p166 = scmp.ne.s32.totalorder %s158, %s160
    %p167 = scmp.eq.s32.totalorder %s24, 1
    %p168 = por %p166, %p167
    %p169 = scmp.ne.s32.totalorder %s160, %s161
    %p170 = scmp.eq.s32.totalorder %s24, 0
    %p171 = por %p169, %p170
    %p172 = scmp.ne.s32.totalorder %s160, %s161
    %p173 = scmp.eq.s32.totalorder %s25, 1
    %p174 = por %p172, %p173
    %p176 = scmp.ne.s32.totalorder %s161, %s175
    %p177 = scmp.eq.s32.totalorder %s25, 0
    %p178 = por %p176, %p177
    %s180 = sadd.s32 %s179, 1
    %p183 = scmp.eq.s32.totalorder %s19, 1
    %p184 = scmp.ne.s32.totalorder %s179, %s181
    %p185 = scmp.eq.s32.totalorder %s19, 0
    %p186 = por %p184, %p185
    %p187 = scmp.ne.s32.totalorder %s179, %s181
    %p188 = scmp.eq.s32.totalorder %s24, 1
    %p189 = por %p187, %p188
    %p190 = scmp.ne.s32.totalorder %s181, %s182
    %p191 = scmp.eq.s32.totalorder %s24, 0
    %p192 = por %p190, %p191
    %p193 = scmp.ne.s32.totalorder %s181, %s182
    %p194 = scmp.eq.s32.totalorder %s25, 1
    %p195 = por %p193, %p194
    %p197 = scmp.ne.s32.totalorder %s182, %s196
    %p198 = scmp.eq.s32.totalorder %s25, 0
    %p199 = por %p197, %p198
    %s201 = sadd.s32 %s200, 1
    %p204 = scmp.eq.s32.totalorder %s19, 1
    %p205 = scmp.ne.s32.totalorder %s200, %s202
    %p206 = scmp.eq.s32.totalorder %s19, 0
    %p207 = por %p205, %p206
    %p208 = scmp.ne.s32.totalorder %s200, %s202
    %p209 = scmp.eq.s32.totalorder %s24, 1
    %p210 = por %p208, %p209
    %p211 = scmp.ne.s32.totalorder %s202, %s203
    %p212 = scmp.eq.s32.totalorder %s24, 0
    %p213 = por %p211, %p212
    %p214 = scmp.ne.s32.totalorder %s202, %s203
    %p215 = scmp.eq.s32.totalorder %s25, 1
    %p216 = por %p214, %p215
    %p218 = scmp.ne.s32.totalorder %s203, %s217
    %p219 = scmp.eq.s32.totalorder %s25, 0
    %p220 = por %p218, %p219
    %s222 = sadd.s32 %s221, 1
    %p225 = scmp.eq.s32.totalorder %s19, 1
    %p226 = scmp.ne.s32.totalorder %s221, %s223
    %p227 = scmp.eq.s32.totalorder %s19, 0
    %p228 = por %p226, %p227
    %p229 = scmp.ne.s32.totalorder %s221, %s223
    %p230 = scmp.eq.s32.totalorder %s24, 1
    %p231 = por %p229, %p230
    %p232 = scmp.ne.s32.totalorder %s223, %s224
    %p233 = scmp.eq.s32.totalorder %s24, 0
    %p234 = por %p232, %p233
    %p235 = scmp.ne.s32.totalorder %s223, %s224
    %p236 = scmp.eq.s32.totalorder %s25, 1
    %p237 = por %p235, %p236
    %p239 = scmp.ne.s32.totalorder %s224, %s238
    %p240 = scmp.eq.s32.totalorder %s25, 0
    %p241 = por %p239, %p240
    %s243 = sadd.s32 %s242, 1
    %p246 = scmp.eq.s32.totalorder %s19, 1
    %p247 = scmp.ne.s32.totalorder %s242, %s244
    %p248 = scmp.eq.s32.totalorder %s19, 0
    %p249 = por %p247, %p248
    %p250 = scmp.ne.s32.totalorder %s242, %s244
    %p251 = scmp.eq.s32.totalorder %s24, 1
    %p252 = por %p250, %p251
    %p253 = scmp.ne.s32.totalorder %s244, %s245
    %p254 = scmp.eq.s32.totalorder %s24, 0
    %p255 = por %p253, %p254
    %p256 = scmp.ne.s32.totalorder %s244, %s245
    %p257 = scmp.eq.s32.totalorder %s25, 1
    %p258 = por %p256, %p257
    %p260 = scmp.ne.s32.totalorder %s245, %s259
    %p261 = scmp.eq.s32.totalorder %s25, 0
    %p262 = por %p260, %p261
    %s264 = sadd.s32 %s263, 1
    %p267 = scmp.eq.s32.totalorder %s19, 1
    %p268 = scmp.ne.s32.totalorder %s263, %s265
    %p269 = scmp.eq.s32.totalorder %s19, 0
    %p270 = por %p268, %p269
    %p271 = scmp.ne.s32.totalorder %s263, %s265
    %p272 = scmp.eq.s32.totalorder %s24, 1
    %p273 = por %p271, %p272
    %p274 = scmp.ne.s32.totalorder %s265, %s266
    %p275 = scmp.eq.s32.totalorder %s24, 0
    %p276 = por %p274, %p275
    %p277 = scmp.ne.s32.totalorder %s265, %s266
    %p278 = scmp.eq.s32.totalorder %s25, 1
    %p279 = por %p277, %p278
    %p281 = scmp.ne.s32.totalorder %s266, %s280
    %p282 = scmp.eq.s32.totalorder %s25, 0
    %p283 = por %p281, %p282
    %s285 = sadd.s32 %s284, 1
    %p288 = scmp.eq.s32.totalorder %s19, 1
    %p289 = scmp.ne.s32.totalorder %s284, %s286
    %p290 = scmp.eq.s32.totalorder %s19, 0
    %p291 = por %p289, %p290
    %p292 = scmp.ne.s32.totalorder %s284, %s286
    %p293 = scmp.eq.s32.totalorder %s24, 1
    %p294 = por %p292, %p293
    %p295 = scmp.ne.s32.totalorder %s286, %s287
    %p296 = scmp.eq.s32.totalorder %s24, 0
    %p297 = por %p295, %p296
    %p298 = scmp.ne.s32.totalorder %s286, %s287
    %p299 = scmp.eq.s32.totalorder %s25, 1
    %p300 = por %p298, %p299
    %p302 = scmp.ne.s32.totalorder %s287, %s301
    %p303 = scmp.eq.s32.totalorder %s25, 0
    %p304 = por %p302, %p303
    %s305 = ssub.s32 %s19, %s26
    %p306 = scmp.eq.s32.totalorder %s305, 0
    %s308 = sadd.s32 %s307, 1
    %s309 = scalar_select %p306, %s307, %s308
    %p312 = pneg %p306
    %p313 = scmp.eq.s32.totalorder %s19, 1
    %p314 = por %p312, %p313
    %p315 = scmp.ne.s32.totalorder %s307, %s310
    %p316 = scmp.eq.s32.totalorder %s19, 0
    %p317 = por %p315, %p316
    %p318 = scmp.ne.s32.totalorder %s307, %s310
    %p319 = scmp.eq.s32.totalorder %s24, 1
    %p320 = por %p318, %p319
    %p321 = scmp.ne.s32.totalorder %s310, %s311
    %p322 = scmp.eq.s32.totalorder %s24, 0
    %p323 = por %p321, %p322
    %p324 = scmp.ne.s32.totalorder %s310, %s311
    %p325 = scmp.eq.s32.totalorder %s25, 1
    %p326 = por %p324, %p325
    %p328 = scmp.ne.s32.totalorder %s311, %s327
    %p329 = scmp.eq.s32.totalorder %s25, 0
    %p330 = por %p328, %p329
    %p331 = scmp.le.s32.totalorder 1, %s19
    %p332 = scmp.lt.s32.totalorder %s19, 3
    %p333 = pnand %p331, %p332
    %p334 = pneg %p333
    // Predicated region
    $region9: #{bottleneck_forward.1} parent=5 // pred_check
      _
    $region10: #{bottleneck_forward.1} parent=5 // pred_check_branch
      %336 = sbr.rel (%p333) target = $region12
    $region11: #{bottleneck_forward.1} parent=5 // pred_region
      %s337 = ssub.s32 %s19, 1
      // Predicated region
      $region13: #{bottleneck_forward.1} parent=11 // pred_check
        %p338 = pneg %p66
      $region14: #{bottleneck_forward.1} parent=11 // pred_check_branch
        %340 = sbr.rel (%p338) target = $region16
      $region15: #{bottleneck_forward.1} parent=11 // pred_region
        _
      $region16: #{bottleneck_forward.1} parent=11 // pred_fallthru
        _
      // Predicated region
      $region17: #{bottleneck_forward.1} parent=11 // pred_check
        %p341 = pneg %p87
      $region18: #{bottleneck_forward.1} parent=11 // pred_check_branch
        %343 = sbr.rel (%p341) target = $region20
      $region19: #{bottleneck_forward.1} parent=11 // pred_region
        _
      $region20: #{bottleneck_forward.1} parent=11 // pred_fallthru
        _
      // Predicated region
      $region21: #{bottleneck_forward.1} parent=11 // pred_check
        %p344 = pneg %p108
      $region22: #{bottleneck_forward.1} parent=11 // pred_check_branch
        %346 = sbr.rel (%p344) target = $region24
      $region23: #{bottleneck_forward.1} parent=11 // pred_region
        _
      $region24: #{bottleneck_forward.1} parent=11 // pred_fallthru
        _
      // Predicated region
      $region25: #{bottleneck_forward.1} parent=11 // pred_check
        %p347 = pneg %p129
      $region26: #{bottleneck_forward.1} parent=11 // pred_check_branch
        %349 = sbr.rel (%p347) target = $region28
      $region27: #{bottleneck_forward.1} parent=11 // pred_region
        _
      $region28: #{bottleneck_forward.1} parent=11 // pred_fallthru
        _
      // Predicated region
      $region29: #{bottleneck_forward.1} parent=11 // pred_check
        %p350 = pneg %p150
      $region30: #{bottleneck_forward.1} parent=11 // pred_check_branch
        %352 = sbr.rel (%p350) target = $region32
      $region31: #{bottleneck_forward.1} parent=11 // pred_region
        _
      $region32: #{bottleneck_forward.1} parent=11 // pred_fallthru
        _
      // Predicated region
      $region33: #{bottleneck_forward.1} parent=11 // pred_check
        %p353 = pneg %p171
      $region34: #{bottleneck_forward.1} parent=11 // pred_check_branch
        %355 = sbr.rel (%p353) target = $region36
      $region35: #{bottleneck_forward.1} parent=11 // pred_region
        _
      $region36: #{bottleneck_forward.1} parent=11 // pred_fallthru
        _
      // Predicated region
      $region37: #{bottleneck_forward.1} parent=11 // pred_check
        %p356 = pneg %p192
      $region38: #{bottleneck_forward.1} parent=11 // pred_check_branch
        %358 = sbr.rel (%p356) target = $region40
      $region39: #{bottleneck_forward.1} parent=11 // pred_region
        _
      $region40: #{bottleneck_forward.1} parent=11 // pred_fallthru
        _
      // Predicated region
      $region41: #{bottleneck_forward.1} parent=11 // pred_check
        %p359 = pneg %p213
      $region42: #{bottleneck_forward.1} parent=11 // pred_check_branch
        %361 = sbr.rel (%p359) target = $region44
      $region43: #{bottleneck_forward.1} parent=11 // pred_region
        _
      $region44: #{bottleneck_forward.1} parent=11 // pred_fallthru
        _
      // Predicated region
      $region45: #{bottleneck_forward.1} parent=11 // pred_check
        %p362 = pneg %p234
      $region46: #{bottleneck_forward.1} parent=11 // pred_check_branch
        %364 = sbr.rel (%p362) target = $region48
      $region47: #{bottleneck_forward.1} parent=11 // pred_region
        _
      $region48: #{bottleneck_forward.1} parent=11 // pred_fallthru
        _
      // Predicated region
      $region49: #{bottleneck_forward.1} parent=11 // pred_check
        %p365 = pneg %p255
      $region50: #{bottleneck_forward.1} parent=11 // pred_check_branch
        %367 = sbr.rel (%p365) target = $region52
      $region51: #{bottleneck_forward.1} parent=11 // pred_region
        _
      $region52: #{bottleneck_forward.1} parent=11 // pred_fallthru
        _
      // Predicated region
      $region53: #{bottleneck_forward.1} parent=11 // pred_check
        %p368 = pneg %p276
      $region54: #{bottleneck_forward.1} parent=11 // pred_check_branch
        %370 = sbr.rel (%p368) target = $region56
      $region55: #{bottleneck_forward.1} parent=11 // pred_region
        _
      $region56: #{bottleneck_forward.1} parent=11 // pred_fallthru
        _
      // Predicated region
      $region57: #{bottleneck_forward.1} parent=11 // pred_check
        %p371 = pneg %p297
      $region58: #{bottleneck_forward.1} parent=11 // pred_check_branch
        %373 = sbr.rel (%p371) target = $region60
      $region59: #{bottleneck_forward.1} parent=11 // pred_region
        _
      $region60: #{bottleneck_forward.1} parent=11 // pred_fallthru
        _
    $region12: #{bottleneck_forward.1} parent=5 // pred_fallthru
      _
    %p374 = scmp.lt.s32.totalorder %s19, 2
    // Predicated region
    $region61: #{bottleneck_forward.1} parent=5 // pred_check
      %p375 = pneg %p374
    $region62: #{bottleneck_forward.1} parent=5 // pred_check_branch
      %377 = sbr.rel (%p375) target = $region64
    $region63: #{bottleneck_forward.1} parent=5 // pred_region
      // Predicated region
      $region65: #{bottleneck_forward.1} parent=63 // pred_check
        %p378 = pneg %p39
      $region66: #{bottleneck_forward.1} parent=63 // pred_check_branch
        %380 = sbr.rel (%p378) target = $region68
      $region67: #{bottleneck_forward.1} parent=63 // pred_region
        %p381 = scmp.lt.s32.totalorder %s19, 1
        %s382 = scalar_select %p381, %s19, 1
        %s383 = smul.addr %s382, 32
        %s384 = smul.addr %s383, 4
        %s385 = scalar_lea.vmem %s0, %s384
      $region68: #{bottleneck_forward.1} parent=63 // pred_fallthru
        _
    $region64: #{bottleneck_forward.1} parent=5 // pred_fallthru
      _
    %p386 = scmp.le.s32.totalorder 1, %s19
    %p387 = scmp.lt.s32.totalorder %s19, 3
    %p388 = pnand %p386, %p387
    %p389 = pneg %p388
    // Predicated region
    $region69: #{bottleneck_forward.1} parent=5 // pred_check
      _
    $region70: #{bottleneck_forward.1} parent=5 // pred_check_branch
      %391 = sbr.rel (%p388) target = $region72
    $region71: #{bottleneck_forward.1} parent=5 // pred_region
      %s392 = ssub.s32 %s19, 1
      %p393 = scmp.lt.s32.totalorder %s24, 1
      %s394 = scalar_select %p393, %s24, 1
      %s395 = smul.addr %s394, 32
      %s396 = smul.addr %s395, 4
      %s397 = scalar_lea.vmem %s0, %s396
      %p398 = pneg %p45
      %p399 = pneg %p42
      %p400 = pneg %p66
      %p401 = pneg %p63
      %p402 = pneg %p87
      %p403 = pneg %p84
      %p404 = pneg %p108
      %p405 = pneg %p105
      %p406 = pneg %p129
      %p407 = pneg %p126
      %p408 = pneg %p150
      %p409 = pneg %p147
      %p410 = pneg %p171
      %p411 = pneg %p168
      %p412 = pneg %p192
      %p413 = pneg %p189
      %p414 = pneg %p213
      %p415 = pneg %p210
      %p416 = pneg %p234
      %p417 = pneg %p231
      %p418 = pneg %p255
      %p419 = pneg %p252
      %p420 = pneg %p276
      %p421 = pneg %p273
      %p422 = pneg %p297
      %p423 = pneg %p294
      %p424 = pneg %p323
      %p425 = pneg %p320
      %p426 = scmp.lt.s32.totalorder %s24, 1
      %s427 = scalar_select %p426, %s24, 1
      %s428 = smul.addr %s427, 8
      %s429 = smul.addr %s428, 8
      %s430 = scalar_lea.vmem %s13, %s429
      %p431 = scmp.lt.s32.totalorder %s24, 1
      %s432 = scalar_select %p431, %s24, 1
      %s433 = smul.addr %s432, 32
      %s434 = smul.addr %s433, 4
      %s435 = scalar_lea.vmem %s0, %s434
      %p436 = scmp.lt.s32.totalorder %s24, 1
      %s437 = scalar_select %p436, %s24, 1
      %s438 = smul.addr %s437, 8
      %s439 = smul.addr %s438, 8
      %s440 = scalar_lea.vmem %s13, %s439
      %441 = vst [vmem:[#allocation2] sm:$0xff] 0.0
      %442 = vst [vmem:[#allocation2 + $0x8] sm:$0xff] 0.0
      %443 = vst [vmem:[#allocation2 + $0x10] sm:$0x1] 0.0
      %444 = vst [vmem:[#allocation2 + $0x18] sm:$0xff] 0.0
      %445 = vst [vmem:[#allocation2 + $0x20] sm:$0xff] 0.0
      %446 = vst [vmem:[#allocation2 + $0x28] sm:$0x1] 0.0
      %447 = vst [vmem:[#allocation2 + $0x30] sm:$0xff] 0.0
      %448 = vst [vmem:[#allocation2 + $0x38] sm:$0xff] 0.0
      %449 = vst [vmem:[#allocation2 + $0x40] sm:$0x1] 0.0
      %450 = vst [vmem:[#allocation2 + $0x48] sm:$0xff] 0.0
      %451 = vst [vmem:[#allocation2 + $0x50] sm:$0xff] 0.0
      %452 = vst [vmem:[#allocation2 + $0x58] sm:$0x1] 0.0
      %453 = vst [vmem:[#allocation2 + $0x60] sm:$0xff] 0.0
      %454 = vst [vmem:[#allocation2 + $0x68] sm:$0xff] 0.0
      %455 = vst [vmem:[#allocation2 + $0x70] sm:$0x1] 0.0
      %456 = vst [vmem:[#allocation2 + $0x78] sm:$0xff] 0.0
      %457 = vst [vmem:[#allocation2 + $0x80] sm:$0xff] 0.0
      %458 = vst [vmem:[#allocation2 + $0x88] sm:$0x1] 0.0
      %459 = vst [vmem:[#allocation2 + $0x90] sm:$0xff] 0.0
      %460 = vst [vmem:[#allocation2 + $0x98] sm:$0xff] 0.0
      %461 = vst [vmem:[#allocation2 + $0xa0] sm:$0x1] 0.0
      %462 = vst [vmem:[#allocation2 + $0xa8] sm:$0xff] 0.0
      %463 = vst [vmem:[#allocation2 + $0xb0] sm:$0xff] 0.0
      %464 = vst [vmem:[#allocation2 + $0xb8] sm:$0x1] 0.0
      %465 = vst [vmem:[#allocation2 + $0xc0] sm:$0xff] 0.0
      %466 = vst [vmem:[#allocation2 + $0xc8] sm:$0xff] 0.0
      %467 = vst [vmem:[#allocation2 + $0xd0] sm:$0x1] 0.0
      %468 = vst [vmem:[#allocation2 + $0xd8] sm:$0xff] 0.0
      %469 = vst [vmem:[#allocation2 + $0xe0] sm:$0xff] 0.0
      %470 = vst [vmem:[#allocation2 + $0xe8] sm:$0x1] 0.0
      %471 = vst [vmem:[#allocation2 + $0xf0] sm:$0xff] 0.0
      %472 = vst [vmem:[#allocation2 + $0xf8] sm:$0xff] 0.0
      %473 = vst [vmem:[#allocation2 + $0x100] sm:$0x1] 0.0
      %474 = vst [vmem:[#allocation2 + $0x108] sm:$0xff] 0.0
      %475 = vst [vmem:[#allocation2 + $0x110] sm:$0xff] 0.0
      %476 = vst [vmem:[#allocation2 + $0x118] sm:$0x1] 0.0
      %477 = vst [vmem:[#allocation2 + $0x120] sm:$0xff] 0.0
      %478 = vst [vmem:[#allocation2 + $0x128] sm:$0xff] 0.0
      %479 = vst [vmem:[#allocation2 + $0x130] sm:$0x1] 0.0
      %480 = vst [vmem:[#allocation2 + $0x138] sm:$0xff] 0.0
      %481 = vst [vmem:[#allocation2 + $0x140] sm:$0xff] 0.0
      %482 = vst [vmem:[#allocation2 + $0x148] sm:$0x1] 0.0
      %483 = vst [vmem:[#allocation2 + $0x150] sm:$0xff] 0.0
      %484 = vst [vmem:[#allocation2 + $0x158] sm:$0xff] 0.0
      %485 = vst [vmem:[#allocation2 + $0x160] sm:$0x1] 0.0
      %486 = vst [vmem:[#allocation2 + $0x168] sm:$0xff] 0.0
      %487 = vst [vmem:[#allocation2 + $0x170] sm:$0xff] 0.0
      %488 = vst [vmem:[#allocation2 + $0x178] sm:$0x1] 0.0
      %489 = vst [vmem:[#allocation2 + $0x180] sm:$0xff] 0.0
      %490 = vst [vmem:[#allocation2 + $0x188] sm:$0xff] 0.0
      %491 = vst [vmem:[#allocation2 + $0x190] sm:$0x1] 0.0
      %492 = vst [vmem:[#allocation2 + $0x198] sm:$0xff] 0.0
      %493 = vst [vmem:[#allocation2 + $0x1a0] sm:$0xff] 0.0
      %494 = vst [vmem:[#allocation2 + $0x1a8] sm:$0x1] 0.0
      %495 = vst [vmem:[#allocation2 + $0x1b0] sm:$0xff] 0.0
      %496 = vst [vmem:[#allocation2 + $0x1b8] sm:$0xff] 0.0
      %497 = vst [vmem:[#allocation2 + $0x1c0] sm:$0x1] 0.0
      %498 = vst [vmem:[#allocation2 + $0x1c8] sm:$0xff] 0.0
      %499 = vst [vmem:[#allocation2 + $0x1d0] sm:$0xff] 0.0
      %500 = vst [vmem:[#allocation2 + $0x1d8] sm:$0x1] 0.0
      %501 = vst [vmem:[#allocation2 + $0x1e0] sm:$0xff] 0.0
      %502 = vst [vmem:[#allocation2 + $0x1e8] sm:$0xff] 0.0
      %503 = vst [vmem:[#allocation2 + $0x1f0] sm:$0x1] 0.0
      %504 = vst [vmem:[#allocation2 + $0x1f8] sm:$0xff] 0.0
      %505 = vst [vmem:[#allocation2 + $0x200] sm:$0xff] 0.0
      %506 = vst [vmem:[#allocation2 + $0x208] sm:$0x1] 0.0
      %507 = vst [vmem:[#allocation2 + $0x210] sm:$0xff] 0.0
      %508 = vst [vmem:[#allocation2 + $0x218] sm:$0xff] 0.0
      %509 = vst [vmem:[#allocation2 + $0x220] sm:$0x1] 0.0
      %510 = vst [vmem:[#allocation2 + $0x228] sm:$0xff] 0.0
      %511 = vst [vmem:[#allocation2 + $0x230] sm:$0xff] 0.0
      %512 = vst [vmem:[#allocation2 + $0x238] sm:$0x1] 0.0
      %513 = vst [vmem:[#allocation2 + $0x240] sm:$0xff] 0.0
      %514 = vst [vmem:[#allocation2 + $0x248] sm:$0xff] 0.0
      %515 = vst [vmem:[#allocation2 + $0x250] sm:$0x1] 0.0
      %516 = vst [vmem:[#allocation2 + $0x258] sm:$0xff] 0.0
      %517 = vst [vmem:[#allocation2 + $0x260] sm:$0xff] 0.0
      %518 = vst [vmem:[#allocation2 + $0x268] sm:$0x1] 0.0
      %519 = vst [vmem:[#allocation2 + $0x270] sm:$0xff] 0.0
      %520 = vst [vmem:[#allocation2 + $0x278] sm:$0xff] 0.0
      %521 = vst [vmem:[#allocation2 + $0x280] sm:$0x1] 0.0
      %522 = vst [vmem:[#allocation2 + $0x288] sm:$0xff] 0.0
      %523 = vst [vmem:[#allocation2 + $0x290] sm:$0xff] 0.0
      %524 = vst [vmem:[#allocation2 + $0x298] sm:$0x1] 0.0
      %525 = vst [vmem:[#allocation2 + $0x2a0] sm:$0xff] 0.0
      %526 = vst [vmem:[#allocation2 + $0x2a8] sm:$0xff] 0.0
      %527 = vst [vmem:[#allocation2 + $0x2b0] sm:$0x1] 0.0
      %528 = vst [vmem:[#allocation2 + $0x2b8] sm:$0xff] 0.0
      %529 = vst [vmem:[#allocation2 + $0x2c0] sm:$0xff] 0.0
      %530 = vst [vmem:[#allocation2 + $0x2c8] sm:$0x1] 0.0
      %531 = vst [vmem:[#allocation2 + $0x2d0] sm:$0xff] 0.0
      %532 = vst [vmem:[#allocation2 + $0x2d8] sm:$0xff] 0.0
      %533 = vst [vmem:[#allocation2 + $0x2e0] sm:$0x1] 0.0
      %534 = vst [vmem:[#allocation2 + $0x2e8] sm:$0xff] 0.0
      %535 = vst [vmem:[#allocation2 + $0x2f0] sm:$0xff] 0.0
      %536 = vst [vmem:[#allocation2 + $0x2f8] sm:$0x1] 0.0
      %537 = vst [vmem:[#allocation2 + $0x300] sm:$0xff] 0.0
      %538 = vst [vmem:[#allocation2 + $0x308] sm:$0xff] 0.0
      %539 = vst [vmem:[#allocation2 + $0x310] sm:$0x1] 0.0
      %540 = vst [vmem:[#allocation2 + $0x318] sm:$0xff] 0.0
      %541 = vst [vmem:[#allocation2 + $0x320] sm:$0xff] 0.0
      %542 = vst [vmem:[#allocation2 + $0x328] sm:$0x1] 0.0
      %543 = vst [vmem:[#allocation2 + $0x330] sm:$0xff] 0.0
      %544 = vst [vmem:[#allocation2 + $0x338] sm:$0xff] 0.0
      %545 = vst [vmem:[#allocation2 + $0x340] sm:$0x1] 0.0
      %546 = vst [vmem:[#allocation2 + $0x348] sm:$0xff] 0.0
      %547 = vst [vmem:[#allocation2 + $0x350] sm:$0xff] 0.0
      %548 = vst [vmem:[#allocation2 + $0x358] sm:$0x1] 0.0
      %549 = vst [vmem:[#allocation2 + $0x360] sm:$0xff] 0.0
      %550 = vst [vmem:[#allocation2 + $0x368] sm:$0xff] 0.0
      %551 = vst [vmem:[#allocation2 + $0x370] sm:$0x1] 0.0
      %552 = vst [vmem:[#allocation2 + $0x378] sm:$0xff] 0.0
      %553 = vst [vmem:[#allocation2 + $0x380] sm:$0xff] 0.0
      %554 = vst [vmem:[#allocation2 + $0x388] sm:$0x1] 0.0
      %555 = vst [vmem:[#allocation2 + $0x390] sm:$0xff] 0.0
      %556 = vst [vmem:[#allocation2 + $0x398] sm:$0xff] 0.0
      %557 = vst [vmem:[#allocation2 + $0x3a0] sm:$0x1] 0.0
      %558 = vst [vmem:[#allocation2 + $0x3a8] sm:$0xff] 0.0
      %559 = vst [vmem:[#allocation2 + $0x3b0] sm:$0xff] 0.0
      %560 = vst [vmem:[#allocation2 + $0x3b8] sm:$0x1] 0.0
      %v561 = vld [vmem:[%s1] sm:$0xf]
      %v562 = vld [vmem:[%s1 + $0x4] sm:$0xf]
      %v563 = vld [vmem:[%s1 + $0x8] sm:$0xf]
      %v564 = vld [vmem:[%s1 + $0xc] sm:$0xf]
      %v565 = vld [vmem:[%s1 + $0x10] sm:$0xf]
      %v566 = vld [vmem:[%s1 + $0x14] sm:$0xf]
      %v567 = vld [vmem:[%s1 + $0x18] sm:$0xf]
      %v568 = vld [vmem:[%s1 + $0x1c] sm:$0xf]
      %v569 = vld [vmem:[%s1 + $0x20] sm:$0xf]
      %v570 = vld [vmem:[%s1 + $0x24] sm:$0xf]
      %v571 = vld [vmem:[%s1 + $0x28] sm:$0xf]
      %v572 = vld [vmem:[%s1 + $0x2c] sm:$0xf]
      %v573 = vld [vmem:[%s1 + $0x30] sm:$0xf]
      %v574 = vld [vmem:[%s1 + $0x34] sm:$0xf]
      %v575 = vld [vmem:[%s1 + $0x38] sm:$0xf]
      %v576 = vld [vmem:[%s1 + $0x3c] sm:$0xf]
      %v577 = vld [vmem:[%s435] sm:$0xf]
      %v578 = vld [vmem:[%s435 + $0x4] sm:$0xf]
      %v579 = vld [vmem:[%s435 + $0x8] sm:$0xf]
      %v580 = vld [vmem:[%s435 + $0xc] sm:$0xf]
      %v581 = vld [vmem:[%s435 + $0x10] sm:$0xf]
      %v582 = vld [vmem:[%s435 + $0x14] sm:$0xf]
      %v583 = vld [vmem:[%s435 + $0x18] sm:$0xf]
      %v584 = vld [vmem:[%s435 + $0x1c] sm:$0xf]
      %v593 = vunpack.c.l.b16 %v577
      %v594 = vunpack.c.l.b16 %v578
      %v595 = vunpack.c.l.b16 %v579
      %v596 = vunpack.c.l.b16 %v580
      %v597 = vunpack.c.l.b16 %v581
      %v598 = vunpack.c.l.b16 %v582
      %v599 = vunpack.c.l.b16 %v583
      %v600 = vunpack.c.l.b16 %v584
      %v601 = vpack.c.b16 %v594, %v593
      %v602 = vpack.c.b16 %v596, %v595
      %v603 = vpack.c.b16 %v598, %v597
      %v604 = vpack.c.b16 %v600, %v599
      %v625 = vunpack.c.l.b16 %v561
      %v626 = vunpack.c.l.b16 %v562
      %v627 = vunpack.c.l.b16 %v563
      %v628 = vunpack.c.l.b16 %v564
      %v629 = vunpack.c.l.b16 %v565
      %v630 = vunpack.c.l.b16 %v566
      %v631 = vunpack.c.l.b16 %v567
      %v632 = vunpack.c.l.b16 %v568
      %v633 = vunpack.c.l.b16 %v569
      %v634 = vunpack.c.l.b16 %v570
      %v635 = vunpack.c.l.b16 %v571
      %v636 = vunpack.c.l.b16 %v572
      %v637 = vunpack.c.l.b16 %v573
      %v638 = vunpack.c.l.b16 %v574
      %v639 = vunpack.c.l.b16 %v575
      %v640 = vunpack.c.l.b16 %v576
      %v641 = vpack.c.b16 %v626, %v625
      %v642 = vpack.c.b16 %v628, %v627
      %v643 = vpack.c.b16 %v630, %v629
      %v644 = vpack.c.b16 %v632, %v631
      %v645 = vpack.c.b16 %v634, %v633
      %v646 = vpack.c.b16 %v636, %v635
      %v647 = vpack.c.b16 %v638, %v637
      %v648 = vpack.c.b16 %v640, %v639
      %657 = vmatpush.bf16.msra.mxu0 %v648
      %658 = vmatpush.bf16.msra.mxu0 %v647
      %659 = vmatpush.bf16.msra.mxu0 %v646
      %660 = vmatpush.bf16.msra.mxu0 %v645
      %661 = vmatpush.bf16.msra.mxu0 %v644
      %662 = vmatpush.bf16.msra.mxu0 %v643
      %663 = vmatpush.bf16.msra.mxu0 %v642
      %664 = vmatpush.bf16.msra.mxu0 %v641
      %665 = vmatmul.bf16.gmra.mxu0 %v601
      %v666 = vpop.f32.mrf.mxu0
      %v667 = vadd.f32 0.0, %v666
      %v668 = vpop.f32.mrf.mxu0
      %v669 = vadd.f32 0.0, %v668
      %670 = vmatmul.bf16.gmra.mxu0 %v602
      %v671 = vpop.f32.mrf.mxu0
      %v672 = vadd.f32 0.0, %v671
      %v673 = vpop.f32.mrf.mxu0
      %v674 = vadd.f32 0.0, %v673
      %675 = vmatmul.bf16.gmra.mxu0 %v603
      %v676 = vpop.f32.mrf.mxu0
      %v677 = vadd.f32 0.0, %v676
      %v678 = vpop.f32.mrf.mxu0
      %v679 = vadd.f32 0.0, %v678
      %680 = vmatmul.bf16.gmra.mxu0 %v604
      %v681 = vpop.f32.mrf.mxu0
      %v682 = vadd.f32 0.0, %v681
      %v683 = vpop.f32.mrf.mxu0
      %v684 = vadd.f32 0.0, %v683
      %685 = vdwg.mxu0
      %v686 = vld [vmem:[%s5] sm:$0x1]
      %v688 = vperm.slane %v686, 0
      %v690 = vmul.f32 %v667, %v688
      %v691 = vmul.f32 %v669, %v688
      %v692 = vmul.f32 %v672, %v688
      %v693 = vmul.f32 %v674, %v688
      %v694 = vmul.f32 %v677, %v688
      %v695 = vmul.f32 %v679, %v688
      %v696 = vmul.f32 %v682, %v688
      %v697 = vmul.f32 %v684, %v688
      %v698 = vld [vmem:[%s6] sm:$0x1]
      %v700 = vperm.slane %v698, 0
      %v702 = vadd.f32 %v690, %v700
      %v703 = vadd.f32 %v691, %v700
      %v704 = vadd.f32 %v692, %v700
      %v705 = vadd.f32 %v693, %v700
      %v706 = vadd.f32 %v694, %v700
      %v707 = vadd.f32 %v695, %v700
      %v708 = vadd.f32 %v696, %v700
      %v709 = vadd.f32 %v697, %v700
      %v710 = vmax.f32 %v702, 0.0
      %v711 = vmax.f32 %v703, 0.0
      %v712 = vmax.f32 %v704, 0.0
      %v713 = vmax.f32 %v705, 0.0
      %v714 = vmax.f32 %v706, 0.0
      %v715 = vmax.f32 %v707, 0.0
      %v716 = vmax.f32 %v708, 0.0
      %v717 = vmax.f32 %v709, 0.0
      %s718 = scalar_lea.vmem [#allocation2], 24
      %719 = vst [vmem:[%s718 + $0x8] sm:$0xff] %v710
      %720 = vst [vmem:[%s718 + $0x20] sm:$0xff] %v711
      %721 = vst [vmem:[%s718 + $0x38] sm:$0xff] %v712
      %722 = vst [vmem:[%s718 + $0x50] sm:$0xff] %v713
      %723 = vst [vmem:[%s718 + $0x68] sm:$0xff] %v714
      %724 = vst [vmem:[%s718 + $0x80] sm:$0xff] %v715
      %725 = vst [vmem:[%s718 + $0x98] sm:$0xff] %v716
      %726 = vst [vmem:[%s718 + $0xb0] sm:$0xff] %v717
      %s727 = scalar_lea.vmem %s435, 32
      %v728 = vld [vmem:[%s727] sm:$0xf]
      %v729 = vld [vmem:[%s727 + $0x4] sm:$0xf]
      %v730 = vld [vmem:[%s727 + $0x8] sm:$0xf]
      %v731 = vld [vmem:[%s727 + $0xc] sm:$0xf]
      %v732 = vld [vmem:[%s727 + $0x10] sm:$0xf]
      %v733 = vld [vmem:[%s727 + $0x14] sm:$0xf]
      %v734 = vld [vmem:[%s727 + $0x18] sm:$0xf]
      %v735 = vld [vmem:[%s727 + $0x1c] sm:$0xf]
      %v744 = vunpack.c.l.b16 %v728
      %v745 = vunpack.c.l.b16 %v729
      %v746 = vunpack.c.l.b16 %v730
      %v747 = vunpack.c.l.b16 %v731
      %v748 = vunpack.c.l.b16 %v732
      %v749 = vunpack.c.l.b16 %v733
      %v750 = vunpack.c.l.b16 %v734
      %v751 = vunpack.c.l.b16 %v735
      %v752 = vpack.c.b16 %v745, %v744
      %v753 = vpack.c.b16 %v747, %v746
      %v754 = vpack.c.b16 %v749, %v748
      %v755 = vpack.c.b16 %v751, %v750
      %760 = vmatpush.bf16.msra.mxu0 %v648
      %761 = vmatpush.bf16.msra.mxu0 %v647
      %762 = vmatpush.bf16.msra.mxu0 %v646
      %763 = vmatpush.bf16.msra.mxu0 %v645
      %764 = vmatpush.bf16.msra.mxu0 %v644
      %765 = vmatpush.bf16.msra.mxu0 %v643
      %766 = vmatpush.bf16.msra.mxu0 %v642
      %767 = vmatpush.bf16.msra.mxu0 %v641
      %768 = vmatmul.bf16.gmra.mxu0 %v752
      %v769 = vpop.f32.mrf.mxu0
      %v770 = vadd.f32 0.0, %v769
      %v771 = vpop.f32.mrf.mxu0
      %v772 = vadd.f32 0.0, %v771
      %773 = vmatmul.bf16.gmra.mxu0 %v753
      %v774 = vpop.f32.mrf.mxu0
      %v775 = vadd.f32 0.0, %v774
      %v776 = vpop.f32.mrf.mxu0
      %v777 = vadd.f32 0.0, %v776
      %778 = vmatmul.bf16.gmra.mxu0 %v754
      %v779 = vpop.f32.mrf.mxu0
      %v780 = vadd.f32 0.0, %v779
      %v781 = vpop.f32.mrf.mxu0
      %v782 = vadd.f32 0.0, %v781
      %783 = vmatmul.bf16.gmra.mxu0 %v755
      %v784 = vpop.f32.mrf.mxu0
      %v785 = vadd.f32 0.0, %v784
      %v786 = vpop.f32.mrf.mxu0
      %v787 = vadd.f32 0.0, %v786
      %788 = vdwg.mxu0
      %v789 = vld [vmem:[%s5] sm:$0x1]
      %v791 = vperm.slane %v789, 0
      %v793 = vmul.f32 %v770, %v791
      %v794 = vmul.f32 %v772, %v791
      %v795 = vmul.f32 %v775, %v791
      %v796 = vmul.f32 %v777, %v791
      %v797 = vmul.f32 %v780, %v791
      %v798 = vmul.f32 %v782, %v791
      %v799 = vmul.f32 %v785, %v791
      %v800 = vmul.f32 %v787, %v791
      %v801 = vld [vmem:[%s6] sm:$0x1]
      %v803 = vperm.slane %v801, 0
      %v805 = vadd.f32 %v793, %v803
      %v806 = vadd.f32 %v794, %v803
      %v807 = vadd.f32 %v795, %v803
      %v808 = vadd.f32 %v796, %v803
      %v809 = vadd.f32 %v797, %v803
      %v810 = vadd.f32 %v798, %v803
      %v811 = vadd.f32 %v799, %v803
      %v812 = vadd.f32 %v800, %v803
      %v813 = vmax.f32 %v805, 0.0
      %v814 = vmax.f32 %v806, 0.0
      %v815 = vmax.f32 %v807, 0.0
      %v816 = vmax.f32 %v808, 0.0
      %v817 = vmax.f32 %v809, 0.0
      %v818 = vmax.f32 %v810, 0.0
      %v819 = vmax.f32 %v811, 0.0
      %v820 = vmax.f32 %v812, 0.0
      %s821 = scalar_lea.vmem [#allocation2], 264
      %822 = vst [vmem:[%s821 + $0x8] sm:$0xff] %v813
      %823 = vst [vmem:[%s821 + $0x20] sm:$0xff] %v814
      %824 = vst [vmem:[%s821 + $0x38] sm:$0xff] %v815
      %825 = vst [vmem:[%s821 + $0x50] sm:$0xff] %v816
      %826 = vst [vmem:[%s821 + $0x68] sm:$0xff] %v817
      %827 = vst [vmem:[%s821 + $0x80] sm:$0xff] %v818
      %828 = vst [vmem:[%s821 + $0x98] sm:$0xff] %v819
      %829 = vst [vmem:[%s821 + $0xb0] sm:$0xff] %v820
      %s830 = scalar_lea.vmem %s435, 64
      %v831 = vld [vmem:[%s830] sm:$0xf]
      %v832 = vld [vmem:[%s830 + $0x4] sm:$0xf]
      %v833 = vld [vmem:[%s830 + $0x8] sm:$0xf]
      %v834 = vld [vmem:[%s830 + $0xc] sm:$0xf]
      %v835 = vld [vmem:[%s830 + $0x10] sm:$0xf]
      %v836 = vld [vmem:[%s830 + $0x14] sm:$0xf]
      %v837 = vld [vmem:[%s830 + $0x18] sm:$0xf]
      %v838 = vld [vmem:[%s830 + $0x1c] sm:$0xf]
      %v847 = vunpack.c.l.b16 %v831
      %v848 = vunpack.c.l.b16 %v832
      %v849 = vunpack.c.l.b16 %v833
      %v850 = vunpack.c.l.b16 %v834
      %v851 = vunpack.c.l.b16 %v835
      %v852 = vunpack.c.l.b16 %v836
      %v853 = vunpack.c.l.b16 %v837
      %v854 = vunpack.c.l.b16 %v838
      %v855 = vpack.c.b16 %v848, %v847
      %v856 = vpack.c.b16 %v850, %v849
      %v857 = vpack.c.b16 %v852, %v851
      %v858 = vpack.c.b16 %v854, %v853
      %863 = vmatpush.bf16.msra.mxu0 %v648
      %864 = vmatpush.bf16.msra.mxu0 %v647
      %865 = vmatpush.bf16.msra.mxu0 %v646
      %866 = vmatpush.bf16.msra.mxu0 %v645
      %867 = vmatpush.bf16.msra.mxu0 %v644
      %868 = vmatpush.bf16.msra.mxu0 %v643
      %869 = vmatpush.bf16.msra.mxu0 %v642
      %870 = vmatpush.bf16.msra.mxu0 %v641
      %871 = vmatmul.bf16.gmra.mxu0 %v855
      %v872 = vpop.f32.mrf.mxu0
      %v873 = vadd.f32 0.0, %v872
      %v874 = vpop.f32.mrf.mxu0
      %v875 = vadd.f32 0.0, %v874
      %876 = vmatmul.bf16.gmra.mxu0 %v856
      %v877 = vpop.f32.mrf.mxu0
      %v878 = vadd.f32 0.0, %v877
      %v879 = vpop.f32.mrf.mxu0
      %v880 = vadd.f32 0.0, %v879
      %881 = vmatmul.bf16.gmra.mxu0 %v857
      %v882 = vpop.f32.mrf.mxu0
      %v883 = vadd.f32 0.0, %v882
      %v884 = vpop.f32.mrf.mxu0
      %v885 = vadd.f32 0.0, %v884
      %886 = vmatmul.bf16.gmra.mxu0 %v858
      %v887 = vpop.f32.mrf.mxu0
      %v888 = vadd.f32 0.0, %v887
      %v889 = vpop.f32.mrf.mxu0
      %v890 = vadd.f32 0.0, %v889
      %891 = vdwg.mxu0
      %v892 = vld [vmem:[%s5] sm:$0x1]
      %v894 = vperm.slane %v892, 0
      %v896 = vmul.f32 %v873, %v894
      %v897 = vmul.f32 %v875, %v894
      %v898 = vmul.f32 %v878, %v894
      %v899 = vmul.f32 %v880, %v894
      %v900 = vmul.f32 %v883, %v894
      %v901 = vmul.f32 %v885, %v894
      %v902 = vmul.f32 %v888, %v894
      %v903 = vmul.f32 %v890, %v894
      %v904 = vld [vmem:[%s6] sm:$0x1]
      %v906 = vperm.slane %v904, 0
      %v908 = vadd.f32 %v896, %v906
      %v909 = vadd.f32 %v897, %v906
      %v910 = vadd.f32 %v898, %v906
      %v911 = vadd.f32 %v899, %v906
      %v912 = vadd.f32 %v900, %v906
      %v913 = vadd.f32 %v901, %v906
      %v914 = vadd.f32 %v902, %v906
      %v915 = vadd.f32 %v903, %v906
      %v916 = vmax.f32 %v908, 0.0
      %v917 = vmax.f32 %v909, 0.0
      %v918 = vmax.f32 %v910, 0.0
      %v919 = vmax.f32 %v911, 0.0
      %v920 = vmax.f32 %v912, 0.0
      %v921 = vmax.f32 %v913, 0.0
      %v922 = vmax.f32 %v914, 0.0
      %v923 = vmax.f32 %v915, 0.0
      %s924 = scalar_lea.vmem [#allocation2], 504
      %925 = vst [vmem:[%s924 + $0x8] sm:$0xff] %v916
      %926 = vst [vmem:[%s924 + $0x20] sm:$0xff] %v917
      %927 = vst [vmem:[%s924 + $0x38] sm:$0xff] %v918
      %928 = vst [vmem:[%s924 + $0x50] sm:$0xff] %v919
      %929 = vst [vmem:[%s924 + $0x68] sm:$0xff] %v920
      %930 = vst [vmem:[%s924 + $0x80] sm:$0xff] %v921
      %931 = vst [vmem:[%s924 + $0x98] sm:$0xff] %v922
      %932 = vst [vmem:[%s924 + $0xb0] sm:$0xff] %v923
      %s933 = scalar_lea.vmem %s435, 96
      %v934 = vld [vmem:[%s933] sm:$0xf]
      %v935 = vld [vmem:[%s933 + $0x4] sm:$0xf]
      %v936 = vld [vmem:[%s933 + $0x8] sm:$0xf]
      %v937 = vld [vmem:[%s933 + $0xc] sm:$0xf]
      %v938 = vld [vmem:[%s933 + $0x10] sm:$0xf]
      %v939 = vld [vmem:[%s933 + $0x14] sm:$0xf]
      %v940 = vld [vmem:[%s933 + $0x18] sm:$0xf]
      %v941 = vld [vmem:[%s933 + $0x1c] sm:$0xf]
      %v950 = vunpack.c.l.b16 %v934
      %v951 = vunpack.c.l.b16 %v935
      %v952 = vunpack.c.l.b16 %v936
      %v953 = vunpack.c.l.b16 %v937
      %v954 = vunpack.c.l.b16 %v938
      %v955 = vunpack.c.l.b16 %v939
      %v956 = vunpack.c.l.b16 %v940
      %v957 = vunpack.c.l.b16 %v941
      %v958 = vpack.c.b16 %v951, %v950
      %v959 = vpack.c.b16 %v953, %v952
      %v960 = vpack.c.b16 %v955, %v954
      %v961 = vpack.c.b16 %v957, %v956
      %966 = vmatpush.bf16.msra.mxu0 %v648
      %967 = vmatpush.bf16.msra.mxu0 %v647
      %968 = vmatpush.bf16.msra.mxu0 %v646
      %969 = vmatpush.bf16.msra.mxu0 %v645
      %970 = vmatpush.bf16.msra.mxu0 %v644
      %971 = vmatpush.bf16.msra.mxu0 %v643
      %972 = vmatpush.bf16.msra.mxu0 %v642
      %973 = vmatpush.bf16.msra.mxu0 %v641
      %974 = vmatmul.bf16.gmra.mxu0 %v958
      %v975 = vpop.f32.mrf.mxu0
      %v976 = vadd.f32 0.0, %v975
      %v977 = vpop.f32.mrf.mxu0
      %v978 = vadd.f32 0.0, %v977
      %979 = vmatmul.bf16.gmra.mxu0 %v959
      %v980 = vpop.f32.mrf.mxu0
      %v981 = vadd.f32 0.0, %v980
      %v982 = vpop.f32.mrf.mxu0
      %v983 = vadd.f32 0.0, %v982
      %984 = vmatmul.bf16.gmra.mxu0 %v960
      %v985 = vpop.f32.mrf.mxu0
      %v986 = vadd.f32 0.0, %v985
      %v987 = vpop.f32.mrf.mxu0
      %v988 = vadd.f32 0.0, %v987
      %989 = vmatmul.bf16.gmra.mxu0 %v961
      %v990 = vpop.f32.mrf.mxu0
      %v991 = vadd.f32 0.0, %v990
      %v992 = vpop.f32.mrf.mxu0
      %v993 = vadd.f32 0.0, %v992
      %994 = vdwg.mxu0
      %v995 = vld [vmem:[%s5] sm:$0x1]
      %v997 = vperm.slane %v995, 0
      %v999 = vmul.f32 %v976, %v997
      %v1000 = vmul.f32 %v978, %v997
      %v1001 = vmul.f32 %v981, %v997
      %v1002 = vmul.f32 %v983, %v997
      %v1003 = vmul.f32 %v986, %v997
      %v1004 = vmul.f32 %v988, %v997
      %v1005 = vmul.f32 %v991, %v997
      %v1006 = vmul.f32 %v993, %v997
      %v1007 = vld [vmem:[%s6] sm:$0x1]
      %v1009 = vperm.slane %v1007, 0
      %v1011 = vadd.f32 %v999, %v1009
      %v1012 = vadd.f32 %v1000, %v1009
      %v1013 = vadd.f32 %v1001, %v1009
      %v1014 = vadd.f32 %v1002, %v1009
      %v1015 = vadd.f32 %v1003, %v1009
      %v1016 = vadd.f32 %v1004, %v1009
      %v1017 = vadd.f32 %v1005, %v1009
      %v1018 = vadd.f32 %v1006, %v1009
      %v1019 = vmax.f32 %v1011, 0.0
      %v1020 = vmax.f32 %v1012, 0.0
      %v1021 = vmax.f32 %v1013, 0.0
      %v1022 = vmax.f32 %v1014, 0.0
      %v1023 = vmax.f32 %v1015, 0.0
      %v1024 = vmax.f32 %v1016, 0.0
      %v1025 = vmax.f32 %v1017, 0.0
      %v1026 = vmax.f32 %v1018, 0.0
      %s1027 = scalar_lea.vmem [#allocation2], 744
      %1028 = vst [vmem:[%s1027 + $0x8] sm:$0xff] %v1019
      %1029 = vst [vmem:[%s1027 + $0x20] sm:$0xff] %v1020
      %1030 = vst [vmem:[%s1027 + $0x38] sm:$0xff] %v1021
      %1031 = vst [vmem:[%s1027 + $0x50] sm:$0xff] %v1022
      %1032 = vst [vmem:[%s1027 + $0x68] sm:$0xff] %v1023
      %1033 = vst [vmem:[%s1027 + $0x80] sm:$0xff] %v1024
      %1034 = vst [vmem:[%s1027 + $0x98] sm:$0xff] %v1025
      %1035 = vst [vmem:[%s1027 + $0xb0] sm:$0xff] %v1026
      %s1036 = scalar_lea.vmem [#allocation2], 720
      %v1037 = vld [vmem:[%s1036 + $0x7] sm:$0xff]
      %v1038 = vld [vmem:[%s1036 + $0x1f] sm:$0xff]
      %v1039 = vld [vmem:[%s1036 + $0x37] sm:$0xff]
      %v1040 = vld [vmem:[%s1036 + $0x4f] sm:$0xff]
      %v1041 = vld [vmem:[%s1036 + $0x67] sm:$0xff]
      %v1042 = vld [vmem:[%s1036 + $0x7f] sm:$0xff]
      %v1043 = vld [vmem:[%s1036 + $0x97] sm:$0xff]
      %v1044 = vld [vmem:[%s1036 + $0xaf] sm:$0xff]
      %v1045 = vpack.c.bf16 %v1038, %v1037
      %v1046 = vpack.c.bf16 %v1040, %v1039
      %v1047 = vpack.c.bf16 %v1042, %v1041
      %v1048 = vpack.c.bf16 %v1044, %v1043
      %v1049 = vld [vmem:[%s2] sm:$0xf]
      %v1050 = vld [vmem:[%s2 + $0x4] sm:$0xf]
      %v1051 = vld [vmem:[%s2 + $0x8] sm:$0xf]
      %v1052 = vld [vmem:[%s2 + $0xc] sm:$0xf]
      %v1053 = vld [vmem:[%s2 + $0x10] sm:$0xf]
      %v1054 = vld [vmem:[%s2 + $0x14] sm:$0xf]
      %v1055 = vld [vmem:[%s2 + $0x18] sm:$0xf]
      %v1056 = vld [vmem:[%s2 + $0x1c] sm:$0xf]
      %v1057 = vld [vmem:[%s2 + $0x20] sm:$0xf]
      %v1058 = vld [vmem:[%s2 + $0x24] sm:$0xf]
      %v1059 = vld [vmem:[%s2 + $0x28] sm:$0xf]
      %v1060 = vld [vmem:[%s2 + $0x2c] sm:$0xf]
      %v1061 = vld [vmem:[%s2 + $0x30] sm:$0xf]
      %v1062 = vld [vmem:[%s2 + $0x34] sm:$0xf]
      %v1063 = vld [vmem:[%s2 + $0x38] sm:$0xf]
      %v1064 = vld [vmem:[%s2 + $0x3c] sm:$0xf]
      %s1065 = scalar_lea.vmem [#allocation2], 480
      %v1066 = vld [vmem:[%s1065 + $0x8] sm:$0xff]
      %v1067 = vld [vmem:[%s1065 + $0x20] sm:$0xff]
      %v1068 = vld [vmem:[%s1065 + $0x38] sm:$0xff]
      %v1069 = vld [vmem:[%s1065 + $0x50] sm:$0xff]
      %v1070 = vld [vmem:[%s1065 + $0x68] sm:$0xff]
      %v1071 = vld [vmem:[%s1065 + $0x80] sm:$0xff]
      %v1072 = vld [vmem:[%s1065 + $0x98] sm:$0xff]
      %v1073 = vld [vmem:[%s1065 + $0xb0] sm:$0xff]
      %v1074 = vpack.c.bf16 %v1067, %v1066
      %v1075 = vpack.c.bf16 %v1069, %v1068
      %v1076 = vpack.c.bf16 %v1071, %v1070
      %v1077 = vpack.c.bf16 %v1073, %v1072
      %s1078 = scalar_lea.vmem %s2, 64
      %v1079 = vld [vmem:[%s1078] sm:$0xf]
      %v1080 = vld [vmem:[%s1078 + $0x4] sm:$0xf]
      %v1081 = vld [vmem:[%s1078 + $0x8] sm:$0xf]
      %v1082 = vld [vmem:[%s1078 + $0xc] sm:$0xf]
      %v1083 = vld [vmem:[%s1078 + $0x10] sm:$0xf]
      %v1084 = vld [vmem:[%s1078 + $0x14] sm:$0xf]
      %v1085 = vld [vmem:[%s1078 + $0x18] sm:$0xf]
      %v1086 = vld [vmem:[%s1078 + $0x1c] sm:$0xf]
      %v1087 = vld [vmem:[%s1078 + $0x20] sm:$0xf]
      %v1088 = vld [vmem:[%s1078 + $0x24] sm:$0xf]
      %v1089 = vld [vmem:[%s1078 + $0x28] sm:$0xf]
      %v1090 = vld [vmem:[%s1078 + $0x2c] sm:$0xf]
      %v1091 = vld [vmem:[%s1078 + $0x30] sm:$0xf]
      %v1092 = vld [vmem:[%s1078 + $0x34] sm:$0xf]
      %v1093 = vld [vmem:[%s1078 + $0x38] sm:$0xf]
      %v1094 = vld [vmem:[%s1078 + $0x3c] sm:$0xf]
      %v1111 = vunpack.c.l.b16 %v1079
      %v1112 = vunpack.c.l.b16 %v1080
      %v1113 = vunpack.c.l.b16 %v1081
      %v1114 = vunpack.c.l.b16 %v1082
      %v1115 = vunpack.c.l.b16 %v1083
      %v1116 = vunpack.c.l.b16 %v1084
      %v1117 = vunpack.c.l.b16 %v1085
      %v1118 = vunpack.c.l.b16 %v1086
      %v1119 = vunpack.c.l.b16 %v1087
      %v1120 = vunpack.c.l.b16 %v1088
      %v1121 = vunpack.c.l.b16 %v1089
      %v1122 = vunpack.c.l.b16 %v1090
      %v1123 = vunpack.c.l.b16 %v1091
      %v1124 = vunpack.c.l.b16 %v1092
      %v1125 = vunpack.c.l.b16 %v1093
      %v1126 = vunpack.c.l.b16 %v1094
      %v1127 = vpack.c.b16 %v1112, %v1111
      %v1128 = vpack.c.b16 %v1114, %v1113
      %v1129 = vpack.c.b16 %v1116, %v1115
      %v1130 = vpack.c.b16 %v1118, %v1117
      %v1131 = vpack.c.b16 %v1120, %v1119
      %v1132 = vpack.c.b16 %v1122, %v1121
      %v1133 = vpack.c.b16 %v1124, %v1123
      %v1134 = vpack.c.b16 %v1126, %v1125
      %1143 = vmatpush.bf16.msra.mxu0 %v1134
      %1144 = vmatpush.bf16.msra.mxu0 %v1133
      %1145 = vmatpush.bf16.msra.mxu0 %v1132
      %1146 = vmatpush.bf16.msra.mxu0 %v1131
      %1147 = vmatpush.bf16.msra.mxu0 %v1130
      %1148 = vmatpush.bf16.msra.mxu0 %v1129
      %1149 = vmatpush.bf16.msra.mxu0 %v1128
      %1150 = vmatpush.bf16.msra.mxu0 %v1127
      %1151 = vmatmul.bf16.gmra.mxu0 %v1074
      %v1152 = vpop.f32.mrf.mxu0
      %v1153 = vadd.f32 0.0, %v1152
      %v1154 = vpop.f32.mrf.mxu0
      %v1155 = vadd.f32 0.0, %v1154
      %1156 = vmatmul.bf16.gmra.mxu0 %v1075
      %v1157 = vpop.f32.mrf.mxu0
      %v1158 = vadd.f32 0.0, %v1157
      %v1159 = vpop.f32.mrf.mxu0
      %v1160 = vadd.f32 0.0, %v1159
      %1161 = vmatmul.bf16.gmra.mxu0 %v1076
      %v1162 = vpop.f32.mrf.mxu0
      %v1163 = vadd.f32 0.0, %v1162
      %v1164 = vpop.f32.mrf.mxu0
      %v1165 = vadd.f32 0.0, %v1164
      %1166 = vmatmul.bf16.gmra.mxu0 %v1077
      %v1167 = vpop.f32.mrf.mxu0
      %v1168 = vadd.f32 0.0, %v1167
      %v1169 = vpop.f32.mrf.mxu0
      %v1170 = vadd.f32 0.0, %v1169
      %1171 = vdwg.mxu0
      %v1188 = vunpack.c.l.b16 %v1049
      %v1189 = vunpack.c.l.b16 %v1050
      %v1190 = vunpack.c.l.b16 %v1051
      %v1191 = vunpack.c.l.b16 %v1052
      %v1192 = vunpack.c.l.b16 %v1053
      %v1193 = vunpack.c.l.b16 %v1054
      %v1194 = vunpack.c.l.b16 %v1055
      %v1195 = vunpack.c.l.b16 %v1056
      %v1196 = vunpack.c.l.b16 %v1057
      %v1197 = vunpack.c.l.b16 %v1058
      %v1198 = vunpack.c.l.b16 %v1059
      %v1199 = vunpack.c.l.b16 %v1060
      %v1200 = vunpack.c.l.b16 %v1061
      %v1201 = vunpack.c.l.b16 %v1062
      %v1202 = vunpack.c.l.b16 %v1063
      %v1203 = vunpack.c.l.b16 %v1064
      %v1204 = vpack.c.b16 %v1189, %v1188
      %v1205 = vpack.c.b16 %v1191, %v1190
      %v1206 = vpack.c.b16 %v1193, %v1192
      %v1207 = vpack.c.b16 %v1195, %v1194
      %v1208 = vpack.c.b16 %v1197, %v1196
      %v1209 = vpack.c.b16 %v1199, %v1198
      %v1210 = vpack.c.b16 %v1201, %v1200
      %v1211 = vpack.c.b16 %v1203, %v1202
      %1220 = vmatpush.bf16.msra.mxu0 %v1211
      %1221 = vmatpush.bf16.msra.mxu0 %v1210
      %1222 = vmatpush.bf16.msra.mxu0 %v1209
      %1223 = vmatpush.bf16.msra.mxu0 %v1208
      %1224 = vmatpush.bf16.msra.mxu0 %v1207
      %1225 = vmatpush.bf16.msra.mxu0 %v1206
      %1226 = vmatpush.bf16.msra.mxu0 %v1205
      %1227 = vmatpush.bf16.msra.mxu0 %v1204
      %1228 = vmatmul.bf16.gmra.mxu0 %v1045
      %v1229 = vpop.f32.mrf.mxu0
      %v1230 = vadd.f32 %v1153, %v1229
      %v1231 = vpop.f32.mrf.mxu0
      %v1232 = vadd.f32 %v1155, %v1231
      %1233 = vmatmul.bf16.gmra.mxu0 %v1046
      %v1234 = vpop.f32.mrf.mxu0
      %v1235 = vadd.f32 %v1158, %v1234
      %v1236 = vpop.f32.mrf.mxu0
      %v1237 = vadd.f32 %v1160, %v1236
      %1238 = vmatmul.bf16.gmra.mxu0 %v1047
      %v1239 = vpop.f32.mrf.mxu0
      %v1240 = vadd.f32 %v1163, %v1239
      %v1241 = vpop.f32.mrf.mxu0
      %v1242 = vadd.f32 %v1165, %v1241
      %1243 = vmatmul.bf16.gmra.mxu0 %v1048
      %v1244 = vpop.f32.mrf.mxu0
      %v1245 = vadd.f32 %v1168, %v1244
      %v1246 = vpop.f32.mrf.mxu0
      %v1247 = vadd.f32 %v1170, %v1246
      %1248 = vdwg.mxu0
      %v1249 = vld [vmem:[%s1036 + $0x8] sm:$0xff]
      %v1250 = vld [vmem:[%s1036 + $0x20] sm:$0xff]
      %v1251 = vld [vmem:[%s1036 + $0x38] sm:$0xff]
      %v1252 = vld [vmem:[%s1036 + $0x50] sm:$0xff]
      %v1253 = vld [vmem:[%s1036 + $0x68] sm:$0xff]
      %v1254 = vld [vmem:[%s1036 + $0x80] sm:$0xff]
      %v1255 = vld [vmem:[%s1036 + $0x98] sm:$0xff]
      %v1256 = vld [vmem:[%s1036 + $0xb0] sm:$0xff]
      %v1257 = vpack.c.bf16 %v1250, %v1249
      %v1258 = vpack.c.bf16 %v1252, %v1251
      %v1259 = vpack.c.bf16 %v1254, %v1253
      %v1260 = vpack.c.bf16 %v1256, %v1255
      %s1261 = scalar_lea.vmem %s2, 128
      %v1262 = vld [vmem:[%s1261] sm:$0xf]
      %v1263 = vld [vmem:[%s1261 + $0x4] sm:$0xf]
      %v1264 = vld [vmem:[%s1261 + $0x8] sm:$0xf]
      %v1265 = vld [vmem:[%s1261 + $0xc] sm:$0xf]
      %v1266 = vld [vmem:[%s1261 + $0x10] sm:$0xf]
      %v1267 = vld [vmem:[%s1261 + $0x14] sm:$0xf]
      %v1268 = vld [vmem:[%s1261 + $0x18] sm:$0xf]
      %v1269 = vld [vmem:[%s1261 + $0x1c] sm:$0xf]
      %v1270 = vld [vmem:[%s1261 + $0x20] sm:$0xf]
      %v1271 = vld [vmem:[%s1261 + $0x24] sm:$0xf]
      %v1272 = vld [vmem:[%s1261 + $0x28] sm:$0xf]
      %v1273 = vld [vmem:[%s1261 + $0x2c] sm:$0xf]
      %v1274 = vld [vmem:[%s1261 + $0x30] sm:$0xf]
      %v1275 = vld [vmem:[%s1261 + $0x34] sm:$0xf]
      %v1276 = vld [vmem:[%s1261 + $0x38] sm:$0xf]
      %v1277 = vld [vmem:[%s1261 + $0x3c] sm:$0xf]
      %v1294 = vunpack.c.l.b16 %v1262
      %v1295 = vunpack.c.l.b16 %v1263
      %v1296 = vunpack.c.l.b16 %v1264
      %v1297 = vunpack.c.l.b16 %v1265
      %v1298 = vunpack.c.l.b16 %v1266
      %v1299 = vunpack.c.l.b16 %v1267
      %v1300 = vunpack.c.l.b16 %v1268
      %v1301 = vunpack.c.l.b16 %v1269
      %v1302 = vunpack.c.l.b16 %v1270
      %v1303 = vunpack.c.l.b16 %v1271
      %v1304 = vunpack.c.l.b16 %v1272
      %v1305 = vunpack.c.l.b16 %v1273
      %v1306 = vunpack.c.l.b16 %v1274
      %v1307 = vunpack.c.l.b16 %v1275
      %v1308 = vunpack.c.l.b16 %v1276
      %v1309 = vunpack.c.l.b16 %v1277
      %v1310 = vpack.c.b16 %v1295, %v1294
      %v1311 = vpack.c.b16 %v1297, %v1296
      %v1312 = vpack.c.b16 %v1299, %v1298
      %v1313 = vpack.c.b16 %v1301, %v1300
      %v1314 = vpack.c.b16 %v1303, %v1302
      %v1315 = vpack.c.b16 %v1305, %v1304
      %v1316 = vpack.c.b16 %v1307, %v1306
      %v1317 = vpack.c.b16 %v1309, %v1308
      %1326 = vmatpush.bf16.msra.mxu0 %v1317
      %1327 = vmatpush.bf16.msra.mxu0 %v1316
      %1328 = vmatpush.bf16.msra.mxu0 %v1315
      %1329 = vmatpush.bf16.msra.mxu0 %v1314
      %1330 = vmatpush.bf16.msra.mxu0 %v1313
      %1331 = vmatpush.bf16.msra.mxu0 %v1312
      %1332 = vmatpush.bf16.msra.mxu0 %v1311
      %1333 = vmatpush.bf16.msra.mxu0 %v1310
      %1334 = vmatmul.bf16.gmra.mxu0 %v1257
      %v1335 = vpop.f32.mrf.mxu0
      %v1336 = vadd.f32 0.0, %v1335
      %v1337 = vpop.f32.mrf.mxu0
      %v1338 = vadd.f32 0.0, %v1337
      %1339 = vmatmul.bf16.gmra.mxu0 %v1258
      %v1340 = vpop.f32.mrf.mxu0
      %v1341 = vadd.f32 0.0, %v1340
      %v1342 = vpop.f32.mrf.mxu0
      %v1343 = vadd.f32 0.0, %v1342
      %1344 = vmatmul.bf16.gmra.mxu0 %v1259
      %v1345 = vpop.f32.mrf.mxu0
      %v1346 = vadd.f32 0.0, %v1345
      %v1347 = vpop.f32.mrf.mxu0
      %v1348 = vadd.f32 0.0, %v1347
      %1349 = vmatmul.bf16.gmra.mxu0 %v1260
      %v1350 = vpop.f32.mrf.mxu0
      %v1351 = vadd.f32 0.0, %v1350
      %v1352 = vpop.f32.mrf.mxu0
      %v1353 = vadd.f32 0.0, %v1352
      %1354 = vdwg.mxu0
      %v1355 = vadd.f32 %v1230, %v1336
      %v1356 = vadd.f32 %v1232, %v1338
      %v1357 = vadd.f32 %v1235, %v1341
      %v1358 = vadd.f32 %v1237, %v1343
      %v1359 = vadd.f32 %v1240, %v1346
      %v1360 = vadd.f32 %v1242, %v1348
      %v1361 = vadd.f32 %v1245, %v1351
      %v1362 = vadd.f32 %v1247, %v1353
      %v1363 = vld [vmem:[%s821 + $0x7] sm:$0xff]
      %v1364 = vld [vmem:[%s821 + $0x1f] sm:$0xff]
      %v1365 = vld [vmem:[%s821 + $0x37] sm:$0xff]
      %v1366 = vld [vmem:[%s821 + $0x4f] sm:$0xff]
      %v1367 = vld [vmem:[%s821 + $0x67] sm:$0xff]
      %v1368 = vld [vmem:[%s821 + $0x7f] sm:$0xff]
      %v1369 = vld [vmem:[%s821 + $0x97] sm:$0xff]
      %v1370 = vld [vmem:[%s821 + $0xaf] sm:$0xff]
      %v1371 = vpack.c.bf16 %v1364, %v1363
      %v1372 = vpack.c.bf16 %v1366, %v1365
      %v1373 = vpack.c.bf16 %v1368, %v1367
      %v1374 = vpack.c.bf16 %v1370, %v1369
      %s1375 = scalar_lea.vmem %s2, 192
      %v1376 = vld [vmem:[%s1375] sm:$0xf]
      %v1377 = vld [vmem:[%s1375 + $0x4] sm:$0xf]
      %v1378 = vld [vmem:[%s1375 + $0x8] sm:$0xf]
      %v1379 = vld [vmem:[%s1375 + $0xc] sm:$0xf]
      %v1380 = vld [vmem:[%s1375 + $0x10] sm:$0xf]
      %v1381 = vld [vmem:[%s1375 + $0x14] sm:$0xf]
      %v1382 = vld [vmem:[%s1375 + $0x18] sm:$0xf]
      %v1383 = vld [vmem:[%s1375 + $0x1c] sm:$0xf]
      %v1384 = vld [vmem:[%s1375 + $0x20] sm:$0xf]
      %v1385 = vld [vmem:[%s1375 + $0x24] sm:$0xf]
      %v1386 = vld [vmem:[%s1375 + $0x28] sm:$0xf]
      %v1387 = vld [vmem:[%s1375 + $0x2c] sm:$0xf]
      %v1388 = vld [vmem:[%s1375 + $0x30] sm:$0xf]
      %v1389 = vld [vmem:[%s1375 + $0x34] sm:$0xf]
      %v1390 = vld [vmem:[%s1375 + $0x38] sm:$0xf]
      %v1391 = vld [vmem:[%s1375 + $0x3c] sm:$0xf]
      %v1408 = vunpack.c.l.b16 %v1376
      %v1409 = vunpack.c.l.b16 %v1377
      %v1410 = vunpack.c.l.b16 %v1378
      %v1411 = vunpack.c.l.b16 %v1379
      %v1412 = vunpack.c.l.b16 %v1380
      %v1413 = vunpack.c.l.b16 %v1381
      %v1414 = vunpack.c.l.b16 %v1382
      %v1415 = vunpack.c.l.b16 %v1383
      %v1416 = vunpack.c.l.b16 %v1384
      %v1417 = vunpack.c.l.b16 %v1385
      %v1418 = vunpack.c.l.b16 %v1386
      %v1419 = vunpack.c.l.b16 %v1387
      %v1420 = vunpack.c.l.b16 %v1388
      %v1421 = vunpack.c.l.b16 %v1389
      %v1422 = vunpack.c.l.b16 %v1390
      %v1423 = vunpack.c.l.b16 %v1391
      %v1424 = vpack.c.b16 %v1409, %v1408
      %v1425 = vpack.c.b16 %v1411, %v1410
      %v1426 = vpack.c.b16 %v1413, %v1412
      %v1427 = vpack.c.b16 %v1415, %v1414
      %v1428 = vpack.c.b16 %v1417, %v1416
      %v1429 = vpack.c.b16 %v1419, %v1418
      %v1430 = vpack.c.b16 %v1421, %v1420
      %v1431 = vpack.c.b16 %v1423, %v1422
      %1440 = vmatpush.bf16.msra.mxu0 %v1431
      %1441 = vmatpush.bf16.msra.mxu0 %v1430
      %1442 = vmatpush.bf16.msra.mxu0 %v1429
      %1443 = vmatpush.bf16.msra.mxu0 %v1428
      %1444 = vmatpush.bf16.msra.mxu0 %v1427
      %1445 = vmatpush.bf16.msra.mxu0 %v1426
      %1446 = vmatpush.bf16.msra.mxu0 %v1425
      %1447 = vmatpush.bf16.msra.mxu0 %v1424
      %1448 = vmatmul.bf16.gmra.mxu0 %v1371
      %v1449 = vpop.f32.mrf.mxu0
      %v1450 = vadd.f32 0.0, %v1449
      %v1451 = vpop.f32.mrf.mxu0
      %v1452 = vadd.f32 0.0, %v1451
      %1453 = vmatmul.bf16.gmra.mxu0 %v1372
      %v1454 = vpop.f32.mrf.mxu0
      %v1455 = vadd.f32 0.0, %v1454
      %v1456 = vpop.f32.mrf.mxu0
      %v1457 = vadd.f32 0.0, %v1456
      %1458 = vmatmul.bf16.gmra.mxu0 %v1373
      %v1459 = vpop.f32.mrf.mxu0
      %v1460 = vadd.f32 0.0, %v1459
      %v1461 = vpop.f32.mrf.mxu0
      %v1462 = vadd.f32 0.0, %v1461
      %1463 = vmatmul.bf16.gmra.mxu0 %v1374
      %v1464 = vpop.f32.mrf.mxu0
      %v1465 = vadd.f32 0.0, %v1464
      %v1466 = vpop.f32.mrf.mxu0
      %v1467 = vadd.f32 0.0, %v1466
      %1468 = vdwg.mxu0
      %v1469 = vadd.f32 %v1355, %v1450
      %v1470 = vadd.f32 %v1356, %v1452
      %v1471 = vadd.f32 %v1357, %v1455
      %v1472 = vadd.f32 %v1358, %v1457
      %v1473 = vadd.f32 %v1359, %v1460
      %v1474 = vadd.f32 %v1360, %v1462
      %v1475 = vadd.f32 %v1361, %v1465
      %v1476 = vadd.f32 %v1362, %v1467
      %v1477 = vld [vmem:[%s718 + $0x8] sm:$0xff]
      %v1478 = vld [vmem:[%s718 + $0x20] sm:$0xff]
      %v1479 = vld [vmem:[%s718 + $0x38] sm:$0xff]
      %v1480 = vld [vmem:[%s718 + $0x50] sm:$0xff]
      %v1481 = vld [vmem:[%s718 + $0x68] sm:$0xff]
      %v1482 = vld [vmem:[%s718 + $0x80] sm:$0xff]
      %v1483 = vld [vmem:[%s718 + $0x98] sm:$0xff]
      %v1484 = vld [vmem:[%s718 + $0xb0] sm:$0xff]
      %v1485 = vpack.c.bf16 %v1478, %v1477
      %v1486 = vpack.c.bf16 %v1480, %v1479
      %v1487 = vpack.c.bf16 %v1482, %v1481
      %v1488 = vpack.c.bf16 %v1484, %v1483
      %s1489 = scalar_lea.vmem %s2, 256
      %v1490 = vld [vmem:[%s1489] sm:$0xf]
      %v1491 = vld [vmem:[%s1489 + $0x4] sm:$0xf]
      %v1492 = vld [vmem:[%s1489 + $0x8] sm:$0xf]
      %v1493 = vld [vmem:[%s1489 + $0xc] sm:$0xf]
      %v1494 = vld [vmem:[%s1489 + $0x10] sm:$0xf]
      %v1495 = vld [vmem:[%s1489 + $0x14] sm:$0xf]
      %v1496 = vld [vmem:[%s1489 + $0x18] sm:$0xf]
      %v1497 = vld [vmem:[%s1489 + $0x1c] sm:$0xf]
      %v1498 = vld [vmem:[%s1489 + $0x20] sm:$0xf]
      %v1499 = vld [vmem:[%s1489 + $0x24] sm:$0xf]
      %v1500 = vld [vmem:[%s1489 + $0x28] sm:$0xf]
      %v1501 = vld [vmem:[%s1489 + $0x2c] sm:$0xf]
      %v1502 = vld [vmem:[%s1489 + $0x30] sm:$0xf]
      %v1503 = vld [vmem:[%s1489 + $0x34] sm:$0xf]
      %v1504 = vld [vmem:[%s1489 + $0x38] sm:$0xf]
      %v1505 = vld [vmem:[%s1489 + $0x3c] sm:$0xf]
      %v1522 = vunpack.c.l.b16 %v1490
      %v1523 = vunpack.c.l.b16 %v1491
      %v1524 = vunpack.c.l.b16 %v1492
      %v1525 = vunpack.c.l.b16 %v1493
      %v1526 = vunpack.c.l.b16 %v1494
      %v1527 = vunpack.c.l.b16 %v1495
      %v1528 = vunpack.c.l.b16 %v1496
      %v1529 = vunpack.c.l.b16 %v1497
      %v1530 = vunpack.c.l.b16 %v1498
      %v1531 = vunpack.c.l.b16 %v1499
      %v1532 = vunpack.c.l.b16 %v1500
      %v1533 = vunpack.c.l.b16 %v1501
      %v1534 = vunpack.c.l.b16 %v1502
      %v1535 = vunpack.c.l.b16 %v1503
      %v1536 = vunpack.c.l.b16 %v1504
      %v1537 = vunpack.c.l.b16 %v1505
      %v1538 = vpack.c.b16 %v1523, %v1522
      %v1539 = vpack.c.b16 %v1525, %v1524
      %v1540 = vpack.c.b16 %v1527, %v1526
      %v1541 = vpack.c.b16 %v1529, %v1528
      %v1542 = vpack.c.b16 %v1531, %v1530
      %v1543 = vpack.c.b16 %v1533, %v1532
      %v1544 = vpack.c.b16 %v1535, %v1534
      %v1545 = vpack.c.b16 %v1537, %v1536
      %1554 = vmatpush.bf16.msra.mxu0 %v1545
      %1555 = vmatpush.bf16.msra.mxu0 %v1544
      %1556 = vmatpush.bf16.msra.mxu0 %v1543
      %1557 = vmatpush.bf16.msra.mxu0 %v1542
      %1558 = vmatpush.bf16.msra.mxu0 %v1541
      %1559 = vmatpush.bf16.msra.mxu0 %v1540
      %1560 = vmatpush.bf16.msra.mxu0 %v1539
      %1561 = vmatpush.bf16.msra.mxu0 %v1538
      %1562 = vmatmul.bf16.gmra.mxu0 %v1485
      %v1563 = vpop.f32.mrf.mxu0
      %v1564 = vadd.f32 0.0, %v1563
      %v1565 = vpop.f32.mrf.mxu0
      %v1566 = vadd.f32 0.0, %v1565
      %1567 = vmatmul.bf16.gmra.mxu0 %v1486
      %v1568 = vpop.f32.mrf.mxu0
      %v1569 = vadd.f32 0.0, %v1568
      %v1570 = vpop.f32.mrf.mxu0
      %v1571 = vadd.f32 0.0, %v1570
      %1572 = vmatmul.bf16.gmra.mxu0 %v1487
      %v1573 = vpop.f32.mrf.mxu0
      %v1574 = vadd.f32 0.0, %v1573
      %v1575 = vpop.f32.mrf.mxu0
      %v1576 = vadd.f32 0.0, %v1575
      %1577 = vmatmul.bf16.gmra.mxu0 %v1488
      %v1578 = vpop.f32.mrf.mxu0
      %v1579 = vadd.f32 0.0, %v1578
      %v1580 = vpop.f32.mrf.mxu0
      %v1581 = vadd.f32 0.0, %v1580
      %1582 = vdwg.mxu0
      %v1583 = vadd.f32 %v1469, %v1564
      %v1584 = vadd.f32 %v1470, %v1566
      %v1585 = vadd.f32 %v1471, %v1569
      %v1586 = vadd.f32 %v1472, %v1571
      %v1587 = vadd.f32 %v1473, %v1574
      %v1588 = vadd.f32 %v1474, %v1576
      %v1589 = vadd.f32 %v1475, %v1579
      %v1590 = vadd.f32 %v1476, %v1581
      %v1591 = vld [vmem:[%s821 + $0x8] sm:$0xff]
      %v1592 = vld [vmem:[%s821 + $0x20] sm:$0xff]
      %v1593 = vld [vmem:[%s821 + $0x38] sm:$0xff]
      %v1594 = vld [vmem:[%s821 + $0x50] sm:$0xff]
      %v1595 = vld [vmem:[%s821 + $0x68] sm:$0xff]
      %v1596 = vld [vmem:[%s821 + $0x80] sm:$0xff]
      %v1597 = vld [vmem:[%s821 + $0x98] sm:$0xff]
      %v1598 = vld [vmem:[%s821 + $0xb0] sm:$0xff]
      %v1599 = vpack.c.bf16 %v1592, %v1591
      %v1600 = vpack.c.bf16 %v1594, %v1593
      %v1601 = vpack.c.bf16 %v1596, %v1595
      %v1602 = vpack.c.bf16 %v1598, %v1597
      %s1603 = scalar_lea.vmem %s2, 320
      %v1604 = vld [vmem:[%s1603] sm:$0xf]
      %v1605 = vld [vmem:[%s1603 + $0x4] sm:$0xf]
      %v1606 = vld [vmem:[%s1603 + $0x8] sm:$0xf]
      %v1607 = vld [vmem:[%s1603 + $0xc] sm:$0xf]
      %v1608 = vld [vmem:[%s1603 + $0x10] sm:$0xf]
      %v1609 = vld [vmem:[%s1603 + $0x14] sm:$0xf]
      %v1610 = vld [vmem:[%s1603 + $0x18] sm:$0xf]
      %v1611 = vld [vmem:[%s1603 + $0x1c] sm:$0xf]
      %v1612 = vld [vmem:[%s1603 + $0x20] sm:$0xf]
      %v1613 = vld [vmem:[%s1603 + $0x24] sm:$0xf]
      %v1614 = vld [vmem:[%s1603 + $0x28] sm:$0xf]
      %v1615 = vld [vmem:[%s1603 + $0x2c] sm:$0xf]
      %v1616 = vld [vmem:[%s1603 + $0x30] sm:$0xf]
      %v1617 = vld [vmem:[%s1603 + $0x34] sm:$0xf]
      %v1618 = vld [vmem:[%s1603 + $0x38] sm:$0xf]
      %v1619 = vld [vmem:[%s1603 + $0x3c] sm:$0xf]
      %v1636 = vunpack.c.l.b16 %v1604
      %v1637 = vunpack.c.l.b16 %v1605
      %v1638 = vunpack.c.l.b16 %v1606
      %v1639 = vunpack.c.l.b16 %v1607
      %v1640 = vunpack.c.l.b16 %v1608
      %v1641 = vunpack.c.l.b16 %v1609
      %v1642 = vunpack.c.l.b16 %v1610
      %v1643 = vunpack.c.l.b16 %v1611
      %v1644 = vunpack.c.l.b16 %v1612
      %v1645 = vunpack.c.l.b16 %v1613
      %v1646 = vunpack.c.l.b16 %v1614
      %v1647 = vunpack.c.l.b16 %v1615
      %v1648 = vunpack.c.l.b16 %v1616
      %v1649 = vunpack.c.l.b16 %v1617
      %v1650 = vunpack.c.l.b16 %v1618
      %v1651 = vunpack.c.l.b16 %v1619
      %v1652 = vpack.c.b16 %v1637, %v1636
      %v1653 = vpack.c.b16 %v1639, %v1638
      %v1654 = vpack.c.b16 %v1641, %v1640
      %v1655 = vpack.c.b16 %v1643, %v1642
      %v1656 = vpack.c.b16 %v1645, %v1644
      %v1657 = vpack.c.b16 %v1647, %v1646
      %v1658 = vpack.c.b16 %v1649, %v1648
      %v1659 = vpack.c.b16 %v1651, %v1650
      %1668 = vmatpush.bf16.msra.mxu0 %v1659
      %1669 = vmatpush.bf16.msra.mxu0 %v1658
      %1670 = vmatpush.bf16.msra.mxu0 %v1657
      %1671 = vmatpush.bf16.msra.mxu0 %v1656
      %1672 = vmatpush.bf16.msra.mxu0 %v1655
      %1673 = vmatpush.bf16.msra.mxu0 %v1654
      %1674 = vmatpush.bf16.msra.mxu0 %v1653
      %1675 = vmatpush.bf16.msra.mxu0 %v1652
      %1676 = vmatmul.bf16.gmra.mxu0 %v1599
      %v1677 = vpop.f32.mrf.mxu0
      %v1678 = vadd.f32 0.0, %v1677
      %v1679 = vpop.f32.mrf.mxu0
      %v1680 = vadd.f32 0.0, %v1679
      %1681 = vmatmul.bf16.gmra.mxu0 %v1600
      %v1682 = vpop.f32.mrf.mxu0
      %v1683 = vadd.f32 0.0, %v1682
      %v1684 = vpop.f32.mrf.mxu0
      %v1685 = vadd.f32 0.0, %v1684
      %1686 = vmatmul.bf16.gmra.mxu0 %v1601
      %v1687 = vpop.f32.mrf.mxu0
      %v1688 = vadd.f32 0.0, %v1687
      %v1689 = vpop.f32.mrf.mxu0
      %v1690 = vadd.f32 0.0, %v1689
      %1691 = vmatmul.bf16.gmra.mxu0 %v1602
      %v1692 = vpop.f32.mrf.mxu0
      %v1693 = vadd.f32 0.0, %v1692
      %v1694 = vpop.f32.mrf.mxu0
      %v1695 = vadd.f32 0.0, %v1694
      %1696 = vdwg.mxu0
      %v1697 = vadd.f32 %v1583, %v1678
      %v1698 = vadd.f32 %v1584, %v1680
      %v1699 = vadd.f32 %v1585, %v1683
      %v1700 = vadd.f32 %v1586, %v1685
      %v1701 = vadd.f32 %v1587, %v1688
      %v1702 = vadd.f32 %v1588, %v1690
      %v1703 = vadd.f32 %v1589, %v1693
      %v1704 = vadd.f32 %v1590, %v1695
      %v1705 = vld [vmem:[%s1027 + $0x7] sm:$0xff]
      %v1706 = vld [vmem:[%s1027 + $0x1f] sm:$0xff]
      %v1707 = vld [vmem:[%s1027 + $0x37] sm:$0xff]
      %v1708 = vld [vmem:[%s1027 + $0x4f] sm:$0xff]
      %v1709 = vld [vmem:[%s1027 + $0x67] sm:$0xff]
      %v1710 = vld [vmem:[%s1027 + $0x7f] sm:$0xff]
      %v1711 = vld [vmem:[%s1027 + $0x97] sm:$0xff]
      %v1712 = vld [vmem:[%s1027 + $0xaf] sm:$0xff]
      %v1713 = vpack.c.bf16 %v1706, %v1705
      %v1714 = vpack.c.bf16 %v1708, %v1707
      %v1715 = vpack.c.bf16 %v1710, %v1709
      %v1716 = vpack.c.bf16 %v1712, %v1711
      %s1717 = scalar_lea.vmem %s2, 384
      %v1718 = vld [vmem:[%s1717] sm:$0xf]
      %v1719 = vld [vmem:[%s1717 + $0x4] sm:$0xf]
      %v1720 = vld [vmem:[%s1717 + $0x8] sm:$0xf]
      %v1721 = vld [vmem:[%s1717 + $0xc] sm:$0xf]
      %v1722 = vld [vmem:[%s1717 + $0x10] sm:$0xf]
      %v1723 = vld [vmem:[%s1717 + $0x14] sm:$0xf]
      %v1724 = vld [vmem:[%s1717 + $0x18] sm:$0xf]
      %v1725 = vld [vmem:[%s1717 + $0x1c] sm:$0xf]
      %v1726 = vld [vmem:[%s1717 + $0x20] sm:$0xf]
      %v1727 = vld [vmem:[%s1717 + $0x24] sm:$0xf]
      %v1728 = vld [vmem:[%s1717 + $0x28] sm:$0xf]
      %v1729 = vld [vmem:[%s1717 + $0x2c] sm:$0xf]
      %v1730 = vld [vmem:[%s1717 + $0x30] sm:$0xf]
      %v1731 = vld [vmem:[%s1717 + $0x34] sm:$0xf]
      %v1732 = vld [vmem:[%s1717 + $0x38] sm:$0xf]
      %v1733 = vld [vmem:[%s1717 + $0x3c] sm:$0xf]
      %v1750 = vunpack.c.l.b16 %v1718
      %v1751 = vunpack.c.l.b16 %v1719
      %v1752 = vunpack.c.l.b16 %v1720
      %v1753 = vunpack.c.l.b16 %v1721
      %v1754 = vunpack.c.l.b16 %v1722
      %v1755 = vunpack.c.l.b16 %v1723
      %v1756 = vunpack.c.l.b16 %v1724
      %v1757 = vunpack.c.l.b16 %v1725
      %v1758 = vunpack.c.l.b16 %v1726
      %v1759 = vunpack.c.l.b16 %v1727
      %v1760 = vunpack.c.l.b16 %v1728
      %v1761 = vunpack.c.l.b16 %v1729
      %v1762 = vunpack.c.l.b16 %v1730
      %v1763 = vunpack.c.l.b16 %v1731
      %v1764 = vunpack.c.l.b16 %v1732
      %v1765 = vunpack.c.l.b16 %v1733
      %v1766 = vpack.c.b16 %v1751, %v1750
      %v1767 = vpack.c.b16 %v1753, %v1752
      %v1768 = vpack.c.b16 %v1755, %v1754
      %v1769 = vpack.c.b16 %v1757, %v1756
      %v1770 = vpack.c.b16 %v1759, %v1758
      %v1771 = vpack.c.b16 %v1761, %v1760
      %v1772 = vpack.c.b16 %v1763, %v1762
      %v1773 = vpack.c.b16 %v1765, %v1764
      %1782 = vmatpush.bf16.msra.mxu0 %v1773
      %1783 = vmatpush.bf16.msra.mxu0 %v1772
      %1784 = vmatpush.bf16.msra.mxu0 %v1771
      %1785 = vmatpush.bf16.msra.mxu0 %v1770
      %1786 = vmatpush.bf16.msra.mxu0 %v1769
      %1787 = vmatpush.bf16.msra.mxu0 %v1768
      %1788 = vmatpush.bf16.msra.mxu0 %v1767
      %1789 = vmatpush.bf16.msra.mxu0 %v1766
      %1790 = vmatmul.bf16.gmra.mxu0 %v1713
      %v1791 = vpop.f32.mrf.mxu0
      %v1792 = vadd.f32 0.0, %v1791
      %v1793 = vpop.f32.mrf.mxu0
      %v1794 = vadd.f32 0.0, %v1793
      %1795 = vmatmul.bf16.gmra.mxu0 %v1714
      %v1796 = vpop.f32.mrf.mxu0
      %v1797 = vadd.f32 0.0, %v1796
      %v1798 = vpop.f32.mrf.mxu0
      %v1799 = vadd.f32 0.0, %v1798
      %1800 = vmatmul.bf16.gmra.mxu0 %v1715
      %v1801 = vpop.f32.mrf.mxu0
      %v1802 = vadd.f32 0.0, %v1801
      %v1803 = vpop.f32.mrf.mxu0
      %v1804 = vadd.f32 0.0, %v1803
      %1805 = vmatmul.bf16.gmra.mxu0 %v1716
      %v1806 = vpop.f32.mrf.mxu0
      %v1807 = vadd.f32 0.0, %v1806
      %v1808 = vpop.f32.mrf.mxu0
      %v1809 = vadd.f32 0.0, %v1808
      %1810 = vdwg.mxu0
      %v1811 = vadd.f32 %v1697, %v1792
      %v1812 = vadd.f32 %v1698, %v1794
      %v1813 = vadd.f32 %v1699, %v1797
      %v1814 = vadd.f32 %v1700, %v1799
      %v1815 = vadd.f32 %v1701, %v1802
      %v1816 = vadd.f32 %v1702, %v1804
      %v1817 = vadd.f32 %v1703, %v1807
      %v1818 = vadd.f32 %v1704, %v1809
      %v1819 = vld [vmem:[%s924 + $0x8] sm:$0xff]
      %v1820 = vld [vmem:[%s924 + $0x20] sm:$0xff]
      %v1821 = vld [vmem:[%s924 + $0x38] sm:$0xff]
      %v1822 = vld [vmem:[%s924 + $0x50] sm:$0xff]
      %v1823 = vld [vmem:[%s924 + $0x68] sm:$0xff]
      %v1824 = vld [vmem:[%s924 + $0x80] sm:$0xff]
      %v1825 = vld [vmem:[%s924 + $0x98] sm:$0xff]
      %v1826 = vld [vmem:[%s924 + $0xb0] sm:$0xff]
      %v1827 = vpack.c.bf16 %v1820, %v1819
      %v1828 = vpack.c.bf16 %v1822, %v1821
      %v1829 = vpack.c.bf16 %v1824, %v1823
      %v1830 = vpack.c.bf16 %v1826, %v1825
      %s1831 = scalar_lea.vmem %s2, 448
      %v1832 = vld [vmem:[%s1831] sm:$0xf]
      %v1833 = vld [vmem:[%s1831 + $0x4] sm:$0xf]
      %v1834 = vld [vmem:[%s1831 + $0x8] sm:$0xf]
      %v1835 = vld [vmem:[%s1831 + $0xc] sm:$0xf]
      %v1836 = vld [vmem:[%s1831 + $0x10] sm:$0xf]
      %v1837 = vld [vmem:[%s1831 + $0x14] sm:$0xf]
      %v1838 = vld [vmem:[%s1831 + $0x18] sm:$0xf]
      %v1839 = vld [vmem:[%s1831 + $0x1c] sm:$0xf]
      %v1840 = vld [vmem:[%s1831 + $0x20] sm:$0xf]
      %v1841 = vld [vmem:[%s1831 + $0x24] sm:$0xf]
      %v1842 = vld [vmem:[%s1831 + $0x28] sm:$0xf]
      %v1843 = vld [vmem:[%s1831 + $0x2c] sm:$0xf]
      %v1844 = vld [vmem:[%s1831 + $0x30] sm:$0xf]
      %v1845 = vld [vmem:[%s1831 + $0x34] sm:$0xf]
      %v1846 = vld [vmem:[%s1831 + $0x38] sm:$0xf]
      %v1847 = vld [vmem:[%s1831 + $0x3c] sm:$0xf]
      %v1864 = vunpack.c.l.b16 %v1832
      %v1865 = vunpack.c.l.b16 %v1833
      %v1866 = vunpack.c.l.b16 %v1834
      %v1867 = vunpack.c.l.b16 %v1835
      %v1868 = vunpack.c.l.b16 %v1836
      %v1869 = vunpack.c.l.b16 %v1837
      %v1870 = vunpack.c.l.b16 %v1838
      %v1871 = vunpack.c.l.b16 %v1839
      %v1872 = vunpack.c.l.b16 %v1840
      %v1873 = vunpack.c.l.b16 %v1841
      %v1874 = vunpack.c.l.b16 %v1842
      %v1875 = vunpack.c.l.b16 %v1843
      %v1876 = vunpack.c.l.b16 %v1844
      %v1877 = vunpack.c.l.b16 %v1845
      %v1878 = vunpack.c.l.b16 %v1846
      %v1879 = vunpack.c.l.b16 %v1847
      %v1880 = vpack.c.b16 %v1865, %v1864
      %v1881 = vpack.c.b16 %v1867, %v1866
      %v1882 = vpack.c.b16 %v1869, %v1868
      %v1883 = vpack.c.b16 %v1871, %v1870
      %v1884 = vpack.c.b16 %v1873, %v1872
      %v1885 = vpack.c.b16 %v1875, %v1874
      %v1886 = vpack.c.b16 %v1877, %v1876
      %v1887 = vpack.c.b16 %v1879, %v1878
      %1896 = vmatpush.bf16.msra.mxu0 %v1887
      %1897 = vmatpush.bf16.msra.mxu0 %v1886
      %1898 = vmatpush.bf16.msra.mxu0 %v1885
      %1899 = vmatpush.bf16.msra.mxu0 %v1884
      %1900 = vmatpush.bf16.msra.mxu0 %v1883
      %1901 = vmatpush.bf16.msra.mxu0 %v1882
      %1902 = vmatpush.bf16.msra.mxu0 %v1881
      %1903 = vmatpush.bf16.msra.mxu0 %v1880
      %1904 = vmatmul.bf16.gmra.mxu0 %v1827
      %v1905 = vpop.f32.mrf.mxu0
      %v1906 = vadd.f32 0.0, %v1905
      %v1907 = vpop.f32.mrf.mxu0
      %v1908 = vadd.f32 0.0, %v1907
      %1909 = vmatmul.bf16.gmra.mxu0 %v1828
      %v1910 = vpop.f32.mrf.mxu0
      %v1911 = vadd.f32 0.0, %v1910
      %v1912 = vpop.f32.mrf.mxu0
      %v1913 = vadd.f32 0.0, %v1912
      %1914 = vmatmul.bf16.gmra.mxu0 %v1829
      %v1915 = vpop.f32.mrf.mxu0
      %v1916 = vadd.f32 0.0, %v1915
      %v1917 = vpop.f32.mrf.mxu0
      %v1918 = vadd.f32 0.0, %v1917
      %1919 = vmatmul.bf16.gmra.mxu0 %v1830
      %v1920 = vpop.f32.mrf.mxu0
      %v1921 = vadd.f32 0.0, %v1920
      %v1922 = vpop.f32.mrf.mxu0
      %v1923 = vadd.f32 0.0, %v1922
      %1924 = vdwg.mxu0
      %v1925 = vadd.f32 %v1811, %v1906
      %v1926 = vadd.f32 %v1812, %v1908
      %v1927 = vadd.f32 %v1813, %v1911
      %v1928 = vadd.f32 %v1814, %v1913
      %v1929 = vadd.f32 %v1815, %v1916
      %v1930 = vadd.f32 %v1816, %v1918
      %v1931 = vadd.f32 %v1817, %v1921
      %v1932 = vadd.f32 %v1818, %v1923
      %v1933 = vld [vmem:[%s1027 + $0x8] sm:$0xff]
      %v1934 = vld [vmem:[%s1027 + $0x20] sm:$0xff]
      %v1935 = vld [vmem:[%s1027 + $0x38] sm:$0xff]
      %v1936 = vld [vmem:[%s1027 + $0x50] sm:$0xff]
      %v1937 = vld [vmem:[%s1027 + $0x68] sm:$0xff]
      %v1938 = vld [vmem:[%s1027 + $0x80] sm:$0xff]
      %v1939 = vld [vmem:[%s1027 + $0x98] sm:$0xff]
      %v1940 = vld [vmem:[%s1027 + $0xb0] sm:$0xff]
      %v1941 = vpack.c.bf16 %v1934, %v1933
      %v1942 = vpack.c.bf16 %v1936, %v1935
      %v1943 = vpack.c.bf16 %v1938, %v1937
      %v1944 = vpack.c.bf16 %v1940, %v1939
      %s1945 = scalar_lea.vmem %s2, 512
      %v1946 = vld [vmem:[%s1945] sm:$0xf]
      %v1947 = vld [vmem:[%s1945 + $0x4] sm:$0xf]
      %v1948 = vld [vmem:[%s1945 + $0x8] sm:$0xf]
      %v1949 = vld [vmem:[%s1945 + $0xc] sm:$0xf]
      %v1950 = vld [vmem:[%s1945 + $0x10] sm:$0xf]
      %v1951 = vld [vmem:[%s1945 + $0x14] sm:$0xf]
      %v1952 = vld [vmem:[%s1945 + $0x18] sm:$0xf]
      %v1953 = vld [vmem:[%s1945 + $0x1c] sm:$0xf]
      %v1954 = vld [vmem:[%s1945 + $0x20] sm:$0xf]
      %v1955 = vld [vmem:[%s1945 + $0x24] sm:$0xf]
      %v1956 = vld [vmem:[%s1945 + $0x28] sm:$0xf]
      %v1957 = vld [vmem:[%s1945 + $0x2c] sm:$0xf]
      %v1958 = vld [vmem:[%s1945 + $0x30] sm:$0xf]
      %v1959 = vld [vmem:[%s1945 + $0x34] sm:$0xf]
      %v1960 = vld [vmem:[%s1945 + $0x38] sm:$0xf]
      %v1961 = vld [vmem:[%s1945 + $0x3c] sm:$0xf]
      %v1978 = vunpack.c.l.b16 %v1946
      %v1979 = vunpack.c.l.b16 %v1947
      %v1980 = vunpack.c.l.b16 %v1948
      %v1981 = vunpack.c.l.b16 %v1949
      %v1982 = vunpack.c.l.b16 %v1950
      %v1983 = vunpack.c.l.b16 %v1951
      %v1984 = vunpack.c.l.b16 %v1952
      %v1985 = vunpack.c.l.b16 %v1953
      %v1986 = vunpack.c.l.b16 %v1954
      %v1987 = vunpack.c.l.b16 %v1955
      %v1988 = vunpack.c.l.b16 %v1956
      %v1989 = vunpack.c.l.b16 %v1957
      %v1990 = vunpack.c.l.b16 %v1958
      %v1991 = vunpack.c.l.b16 %v1959
      %v1992 = vunpack.c.l.b16 %v1960
      %v1993 = vunpack.c.l.b16 %v1961
      %v1994 = vpack.c.b16 %v1979, %v1978
      %v1995 = vpack.c.b16 %v1981, %v1980
      %v1996 = vpack.c.b16 %v1983, %v1982
      %v1997 = vpack.c.b16 %v1985, %v1984
      %v1998 = vpack.c.b16 %v1987, %v1986
      %v1999 = vpack.c.b16 %v1989, %v1988
      %v2000 = vpack.c.b16 %v1991, %v1990
      %v2001 = vpack.c.b16 %v1993, %v1992
      %2010 = vmatpush.bf16.msra.mxu0 %v2001
      %2011 = vmatpush.bf16.msra.mxu0 %v2000
      %2012 = vmatpush.bf16.msra.mxu0 %v1999
      %2013 = vmatpush.bf16.msra.mxu0 %v1998
      %2014 = vmatpush.bf16.msra.mxu0 %v1997
      %2015 = vmatpush.bf16.msra.mxu0 %v1996
      %2016 = vmatpush.bf16.msra.mxu0 %v1995
      %2017 = vmatpush.bf16.msra.mxu0 %v1994
      %2018 = vmatmul.bf16.gmra.mxu0 %v1941
      %v2019 = vpop.f32.mrf.mxu0
      %v2020 = vadd.f32 0.0, %v2019
      %v2021 = vpop.f32.mrf.mxu0
      %v2022 = vadd.f32 0.0, %v2021
      %2023 = vmatmul.bf16.gmra.mxu0 %v1942
      %v2024 = vpop.f32.mrf.mxu0
      %v2025 = vadd.f32 0.0, %v2024
      %v2026 = vpop.f32.mrf.mxu0
      %v2027 = vadd.f32 0.0, %v2026
      %2028 = vmatmul.bf16.gmra.mxu0 %v1943
      %v2029 = vpop.f32.mrf.mxu0
      %v2030 = vadd.f32 0.0, %v2029
      %v2031 = vpop.f32.mrf.mxu0
      %v2032 = vadd.f32 0.0, %v2031
      %2033 = vmatmul.bf16.gmra.mxu0 %v1944
      %v2034 = vpop.f32.mrf.mxu0
      %v2035 = vadd.f32 0.0, %v2034
      %v2036 = vpop.f32.mrf.mxu0
      %v2037 = vadd.f32 0.0, %v2036
      %2038 = vdwg.mxu0
      %v2039 = vadd.f32 %v1925, %v2020
      %v2040 = vadd.f32 %v1926, %v2022
      %v2041 = vadd.f32 %v1927, %v2025
      %v2042 = vadd.f32 %v1928, %v2027
      %v2043 = vadd.f32 %v1929, %v2030
      %v2044 = vadd.f32 %v1930, %v2032
      %v2045 = vadd.f32 %v1931, %v2035
      %v2046 = vadd.f32 %v1932, %v2037
      %v2047 = vld [vmem:[%s7] sm:$0x1]
      %v2049 = vperm.slane %v2047, 0
      %v2051 = vmul.f32 %v2039, %v2049
      %v2052 = vmul.f32 %v2040, %v2049
      %v2053 = vmul.f32 %v2041, %v2049
      %v2054 = vmul.f32 %v2042, %v2049
      %v2055 = vmul.f32 %v2043, %v2049
      %v2056 = vmul.f32 %v2044, %v2049
      %v2057 = vmul.f32 %v2045, %v2049
      %v2058 = vmul.f32 %v2046, %v2049
      %v2059 = vld [vmem:[%s8] sm:$0x1]
      %v2061 = vperm.slane %v2059, 0
      %v2063 = vadd.f32 %v2051, %v2061
      %v2064 = vadd.f32 %v2052, %v2061
      %v2065 = vadd.f32 %v2053, %v2061
      %v2066 = vadd.f32 %v2054, %v2061
      %v2067 = vadd.f32 %v2055, %v2061
      %v2068 = vadd.f32 %v2056, %v2061
      %v2069 = vadd.f32 %v2057, %v2061
      %v2070 = vadd.f32 %v2058, %v2061
      %v2071 = vmax.f32 %v2063, 0.0
      %v2072 = vmax.f32 %v2064, 0.0
      %v2073 = vmax.f32 %v2065, 0.0
      %v2074 = vmax.f32 %v2066, 0.0
      %v2075 = vmax.f32 %v2067, 0.0
      %v2076 = vmax.f32 %v2068, 0.0
      %v2077 = vmax.f32 %v2069, 0.0
      %v2078 = vmax.f32 %v2070, 0.0
      %v2079 = vpack.c.bf16 %v2072, %v2071
      %v2080 = vpack.c.bf16 %v2074, %v2073
      %v2081 = vpack.c.bf16 %v2076, %v2075
      %v2082 = vpack.c.bf16 %v2078, %v2077
      %v2083 = vld [vmem:[%s3] sm:$0xf]
      %v2084 = vld [vmem:[%s3 + $0x4] sm:$0xf]
      %v2085 = vld [vmem:[%s3 + $0x8] sm:$0xf]
      %v2086 = vld [vmem:[%s3 + $0xc] sm:$0xf]
      %v2087 = vld [vmem:[%s3 + $0x10] sm:$0xf]
      %v2088 = vld [vmem:[%s3 + $0x14] sm:$0xf]
      %v2089 = vld [vmem:[%s3 + $0x18] sm:$0xf]
      %v2090 = vld [vmem:[%s3 + $0x1c] sm:$0xf]
      %v2091 = vld [vmem:[%s3 + $0x20] sm:$0xf]
      %v2092 = vld [vmem:[%s3 + $0x24] sm:$0xf]
      %v2093 = vld [vmem:[%s3 + $0x28] sm:$0xf]
      %v2094 = vld [vmem:[%s3 + $0x2c] sm:$0xf]
      %v2095 = vld [vmem:[%s3 + $0x30] sm:$0xf]
      %v2096 = vld [vmem:[%s3 + $0x34] sm:$0xf]
      %v2097 = vld [vmem:[%s3 + $0x38] sm:$0xf]
      %v2098 = vld [vmem:[%s3 + $0x3c] sm:$0xf]
      %v2115 = vunpack.c.l.b16 %v2083
      %v2116 = vunpack.c.l.b16 %v2084
      %v2117 = vunpack.c.l.b16 %v2085
      %v2118 = vunpack.c.l.b16 %v2086
      %v2119 = vunpack.c.l.b16 %v2087
      %v2120 = vunpack.c.l.b16 %v2088
      %v2121 = vunpack.c.l.b16 %v2089
      %v2122 = vunpack.c.l.b16 %v2090
      %v2123 = vunpack.c.l.b16 %v2091
      %v2124 = vunpack.c.l.b16 %v2092
      %v2125 = vunpack.c.l.b16 %v2093
      %v2126 = vunpack.c.l.b16 %v2094
      %v2127 = vunpack.c.l.b16 %v2095
      %v2128 = vunpack.c.l.b16 %v2096
      %v2129 = vunpack.c.l.b16 %v2097
      %v2130 = vunpack.c.l.b16 %v2098
      %v2131 = vpack.c.b16 %v2116, %v2115
      %v2132 = vpack.c.b16 %v2118, %v2117
      %v2133 = vpack.c.b16 %v2120, %v2119
      %v2134 = vpack.c.b16 %v2122, %v2121
      %v2135 = vpack.c.b16 %v2124, %v2123
      %v2136 = vpack.c.b16 %v2126, %v2125
      %v2137 = vpack.c.b16 %v2128, %v2127
      %v2138 = vpack.c.b16 %v2130, %v2129
      %2147 = vmatpush.bf16.msra.mxu0 %v2138
      %2148 = vmatpush.bf16.msra.mxu0 %v2137
      %2149 = vmatpush.bf16.msra.mxu0 %v2136
      %2150 = vmatpush.bf16.msra.mxu0 %v2135
      %2151 = vmatpush.bf16.msra.mxu0 %v2134
      %2152 = vmatpush.bf16.msra.mxu0 %v2133
      %2153 = vmatpush.bf16.msra.mxu0 %v2132
      %2154 = vmatpush.bf16.msra.mxu0 %v2131
      %2155 = vmatmul.bf16.gmra.mxu0 %v2079
      %v2156 = vpop.f32.mrf.mxu0
      %v2157 = vadd.f32 0.0, %v2156
      %v2158 = vpop.f32.mrf.mxu0
      %v2159 = vadd.f32 0.0, %v2158
      %2160 = vmatmul.bf16.gmra.mxu0 %v2080
      %v2161 = vpop.f32.mrf.mxu0
      %v2162 = vadd.f32 0.0, %v2161
      %v2163 = vpop.f32.mrf.mxu0
      %v2164 = vadd.f32 0.0, %v2163
      %2165 = vmatmul.bf16.gmra.mxu0 %v2081
      %v2166 = vpop.f32.mrf.mxu0
      %v2167 = vadd.f32 0.0, %v2166
      %v2168 = vpop.f32.mrf.mxu0
      %v2169 = vadd.f32 0.0, %v2168
      %2170 = vmatmul.bf16.gmra.mxu0 %v2082
      %v2171 = vpop.f32.mrf.mxu0
      %v2172 = vadd.f32 0.0, %v2171
      %v2173 = vpop.f32.mrf.mxu0
      %v2174 = vadd.f32 0.0, %v2173
      %2175 = vdwg.mxu0
      %v2176 = vld [vmem:[%s9] sm:$0x1]
      %v2178 = vperm.slane %v2176, 0
      %v2180 = vmul.f32 %v2157, %v2178
      %v2181 = vmul.f32 %v2159, %v2178
      %v2182 = vmul.f32 %v2162, %v2178
      %v2183 = vmul.f32 %v2164, %v2178
      %v2184 = vmul.f32 %v2167, %v2178
      %v2185 = vmul.f32 %v2169, %v2178
      %v2186 = vmul.f32 %v2172, %v2178
      %v2187 = vmul.f32 %v2174, %v2178
      %v2188 = vld [vmem:[%s10] sm:$0x1]
      %v2190 = vperm.slane %v2188, 0
      %v2192 = vadd.f32 %v2180, %v2190
      %v2193 = vadd.f32 %v2181, %v2190
      %v2194 = vadd.f32 %v2182, %v2190
      %v2195 = vadd.f32 %v2183, %v2190
      %v2196 = vadd.f32 %v2184, %v2190
      %v2197 = vadd.f32 %v2185, %v2190
      %v2198 = vadd.f32 %v2186, %v2190
      %v2199 = vadd.f32 %v2187, %v2190
      %v2200 = vld [vmem:[%s435] sm:$0xf]
      %v2201 = vld [vmem:[%s435 + $0x4] sm:$0xf]
      %v2202 = vld [vmem:[%s435 + $0x8] sm:$0xf]
      %v2203 = vld [vmem:[%s435 + $0xc] sm:$0xf]
      %v2204 = vld [vmem:[%s435 + $0x10] sm:$0xf]
      %v2205 = vld [vmem:[%s435 + $0x14] sm:$0xf]
      %v2206 = vld [vmem:[%s435 + $0x18] sm:$0xf]
      %v2207 = vld [vmem:[%s435 + $0x1c] sm:$0xf]
      %v2208 = vld [vmem:[%s4] sm:$0xf]
      %v2209 = vld [vmem:[%s4 + $0x4] sm:$0xf]
      %v2210 = vld [vmem:[%s4 + $0x8] sm:$0xf]
      %v2211 = vld [vmem:[%s4 + $0xc] sm:$0xf]
      %v2212 = vld [vmem:[%s4 + $0x10] sm:$0xf]
      %v2213 = vld [vmem:[%s4 + $0x14] sm:$0xf]
      %v2214 = vld [vmem:[%s4 + $0x18] sm:$0xf]
      %v2215 = vld [vmem:[%s4 + $0x1c] sm:$0xf]
      %v2216 = vld [vmem:[%s4 + $0x20] sm:$0xf]
      %v2217 = vld [vmem:[%s4 + $0x24] sm:$0xf]
      %v2218 = vld [vmem:[%s4 + $0x28] sm:$0xf]
      %v2219 = vld [vmem:[%s4 + $0x2c] sm:$0xf]
      %v2220 = vld [vmem:[%s4 + $0x30] sm:$0xf]
      %v2221 = vld [vmem:[%s4 + $0x34] sm:$0xf]
      %v2222 = vld [vmem:[%s4 + $0x38] sm:$0xf]
      %v2223 = vld [vmem:[%s4 + $0x3c] sm:$0xf]
      %v2232 = vunpack.c.l.b16 %v2200
      %v2233 = vunpack.c.l.b16 %v2201
      %v2234 = vunpack.c.l.b16 %v2202
      %v2235 = vunpack.c.l.b16 %v2203
      %v2236 = vunpack.c.l.b16 %v2204
      %v2237 = vunpack.c.l.b16 %v2205
      %v2238 = vunpack.c.l.b16 %v2206
      %v2239 = vunpack.c.l.b16 %v2207
      %v2240 = vpack.c.b16 %v2233, %v2232
      %v2241 = vpack.c.b16 %v2235, %v2234
      %v2242 = vpack.c.b16 %v2237, %v2236
      %v2243 = vpack.c.b16 %v2239, %v2238
      %v2264 = vunpack.c.l.b16 %v2208
      %v2265 = vunpack.c.l.b16 %v2209
      %v2266 = vunpack.c.l.b16 %v2210
      %v2267 = vunpack.c.l.b16 %v2211
      %v2268 = vunpack.c.l.b16 %v2212
      %v2269 = vunpack.c.l.b16 %v2213
      %v2270 = vunpack.c.l.b16 %v2214
      %v2271 = vunpack.c.l.b16 %v2215
      %v2272 = vunpack.c.l.b16 %v2216
      %v2273 = vunpack.c.l.b16 %v2217
      %v2274 = vunpack.c.l.b16 %v2218
      %v2275 = vunpack.c.l.b16 %v2219
      %v2276 = vunpack.c.l.b16 %v2220
      %v2277 = vunpack.c.l.b16 %v2221
      %v2278 = vunpack.c.l.b16 %v2222
      %v2279 = vunpack.c.l.b16 %v2223
      %v2280 = vpack.c.b16 %v2265, %v2264
      %v2281 = vpack.c.b16 %v2267, %v2266
      %v2282 = vpack.c.b16 %v2269, %v2268
      %v2283 = vpack.c.b16 %v2271, %v2270
      %v2284 = vpack.c.b16 %v2273, %v2272
      %v2285 = vpack.c.b16 %v2275, %v2274
      %v2286 = vpack.c.b16 %v2277, %v2276
      %v2287 = vpack.c.b16 %v2279, %v2278
      %2296 = vmatpush.bf16.msra.mxu0 %v2287
      %2297 = vmatpush.bf16.msra.mxu0 %v2286
      %2298 = vmatpush.bf16.msra.mxu0 %v2285
      %2299 = vmatpush.bf16.msra.mxu0 %v2284
      %2300 = vmatpush.bf16.msra.mxu0 %v2283
      %2301 = vmatpush.bf16.msra.mxu0 %v2282
      %2302 = vmatpush.bf16.msra.mxu0 %v2281
      %2303 = vmatpush.bf16.msra.mxu0 %v2280
      %2304 = vmatmul.bf16.gmra.mxu0 %v2240
      %v2305 = vpop.f32.mrf.mxu0
      %v2306 = vadd.f32 0.0, %v2305
      %v2307 = vpop.f32.mrf.mxu0
      %v2308 = vadd.f32 0.0, %v2307
      %2309 = vmatmul.bf16.gmra.mxu0 %v2241
      %v2310 = vpop.f32.mrf.mxu0
      %v2311 = vadd.f32 0.0, %v2310
      %v2312 = vpop.f32.mrf.mxu0
      %v2313 = vadd.f32 0.0, %v2312
      %2314 = vmatmul.bf16.gmra.mxu0 %v2242
      %v2315 = vpop.f32.mrf.mxu0
      %v2316 = vadd.f32 0.0, %v2315
      %v2317 = vpop.f32.mrf.mxu0
      %v2318 = vadd.f32 0.0, %v2317
      %2319 = vmatmul.bf16.gmra.mxu0 %v2243
      %v2320 = vpop.f32.mrf.mxu0
      %v2321 = vadd.f32 0.0, %v2320
      %v2322 = vpop.f32.mrf.mxu0
      %v2323 = vadd.f32 0.0, %v2322
      %2324 = vdwg.mxu0
      %v2325 = vld [vmem:[%s11] sm:$0x1]
      %v2327 = vperm.slane %v2325, 0
      %v2329 = vmul.f32 %v2306, %v2327
      %v2330 = vmul.f32 %v2308, %v2327
      %v2331 = vmul.f32 %v2311, %v2327
      %v2332 = vmul.f32 %v2313, %v2327
      %v2333 = vmul.f32 %v2316, %v2327
      %v2334 = vmul.f32 %v2318, %v2327
      %v2335 = vmul.f32 %v2321, %v2327
      %v2336 = vmul.f32 %v2323, %v2327
      %v2337 = vld [vmem:[%s12] sm:$0x1]
      %v2339 = vperm.slane %v2337, 0
      %v2341 = vadd.f32 %v2329, %v2339
      %v2342 = vadd.f32 %v2330, %v2339
      %v2343 = vadd.f32 %v2331, %v2339
      %v2344 = vadd.f32 %v2332, %v2339
      %v2345 = vadd.f32 %v2333, %v2339
      %v2346 = vadd.f32 %v2334, %v2339
      %v2347 = vadd.f32 %v2335, %v2339
      %v2348 = vadd.f32 %v2336, %v2339
      %v2349 = vadd.f32 %v2192, %v2341
      %v2350 = vadd.f32 %v2193, %v2342
      %v2351 = vadd.f32 %v2194, %v2343
      %v2352 = vadd.f32 %v2195, %v2344
      %v2353 = vadd.f32 %v2196, %v2345
      %v2354 = vadd.f32 %v2197, %v2346
      %v2355 = vadd.f32 %v2198, %v2347
      %v2356 = vadd.f32 %v2199, %v2348
      %v2357 = vmax.f32 %v2349, 0.0
      %v2358 = vmax.f32 %v2350, 0.0
      %v2359 = vmax.f32 %v2351, 0.0
      %v2360 = vmax.f32 %v2352, 0.0
      %v2361 = vmax.f32 %v2353, 0.0
      %v2362 = vmax.f32 %v2354, 0.0
      %v2363 = vmax.f32 %v2355, 0.0
      %v2364 = vmax.f32 %v2356, 0.0
      %2365 = vst [vmem:[%s440] sm:$0xff] %v2357
      %2366 = vst [vmem:[%s440 + $0x8] sm:$0xff] %v2358
      %2367 = vst [vmem:[%s440 + $0x10] sm:$0xff] %v2359
      %2368 = vst [vmem:[%s440 + $0x18] sm:$0xff] %v2360
      %2369 = vst [vmem:[%s440 + $0x20] sm:$0xff] %v2361
      %2370 = vst [vmem:[%s440 + $0x28] sm:$0xff] %v2362
      %2371 = vst [vmem:[%s440 + $0x30] sm:$0xff] %v2363
      %2372 = vst [vmem:[%s440 + $0x38] sm:$0xff] %v2364
      %p2373 = scmp.lt.s32.totalorder %s24, 1
      %s2374 = scalar_select %p2373, %s24, 1
      %s2375 = smul.addr %s2374, 8
      %s2376 = smul.addr %s2375, 8
      %s2377 = scalar_lea.vmem %s13, %s2376
      // Predicated region
      $region73: #{bottleneck_forward.1} parent=71 // pred_check
        %p2378 = pneg %p320
      $region74: #{bottleneck_forward.1} parent=71 // pred_check_branch
        %2380 = sbr.rel (%p2378) target = $region76
      $region75: #{bottleneck_forward.1} parent=71 // pred_region
        _
      $region76: #{bottleneck_forward.1} parent=71 // pred_fallthru
        _
    $region72: #{bottleneck_forward.1} parent=5 // pred_fallthru
      _
    %p2381 = scmp.le.s32.totalorder 2, %s19
    // Predicated region
    $region77: #{bottleneck_forward.1} parent=5 // pred_check
      %p2382 = pneg %p2381
    $region78: #{bottleneck_forward.1} parent=5 // pred_check_branch
      %2384 = sbr.rel (%p2382) target = $region80
    $region79: #{bottleneck_forward.1} parent=5 // pred_region
      %s2385 = ssub.s32 %s19, 2
      // Predicated region
      $region81: #{bottleneck_forward.1} parent=79 // pred_check
        %p2386 = pneg %p326
      $region82: #{bottleneck_forward.1} parent=79 // pred_check_branch
        %2388 = sbr.rel (%p2386) target = $region84
      $region83: #{bottleneck_forward.1} parent=79 // pred_region
        %p2389 = scmp.lt.s32.totalorder %s25, 1
        %s2390 = scalar_select %p2389, %s25, 1
        %s2391 = smul.addr %s2390, 8
        %s2392 = smul.addr %s2391, 8
        %s2393 = scalar_lea.vmem %s13, %s2392
      $region84: #{bottleneck_forward.1} parent=79 // pred_fallthru
        _
    $region80: #{bottleneck_forward.1} parent=5 // pred_fallthru
      _
  $region6: #{bottleneck_forward.1} parent=0 // loop_footer
    %s23 = sadd.s32 1, %s19
  $region7: #{bottleneck_forward.1} parent=0 // loop_footer_branch
    %18 = sbr.rel target = $region3
  $region8: #{bottleneck_forward.1} parent=0 // loop_exit
    _

</llo_original>
